<compile_context>
chip_gen: v7x
topology: tpu7x:2x2x1
jax: 0.10.0
libtpu: 0.0.40
codegen_flags: <defaults>
</compile_context>

<pallas_src>
import functools
import numpy as np
import jax
import jax.numpy as jnp
from jax import lax
from jax.experimental import pallas as pl
from jax.experimental.pallas import tpu as pltpu


# ----------------------------------------------------------------------------
# Anchor helpers (host-side numpy glue, exactly mirroring the PyTorch module)
# ----------------------------------------------------------------------------
def generate_anchor_base(base_size=16, ratios=(0.5, 1, 2), anchor_scales=(8, 16, 32)):
    py = base_size / 2.0
    px = base_size / 2.0
    anchor_base = np.zeros((len(ratios) * len(anchor_scales), 4), dtype=np.float32)
    for i in range(len(ratios)):
        for j in range(len(anchor_scales)):
            h = base_size * anchor_scales[j] * np.sqrt(ratios[i])
            w = base_size * anchor_scales[j] * np.sqrt(1.0 / ratios[i])
            index = i * len(anchor_scales) + j
            anchor_base[index, 0] = py - h / 2.0
            anchor_base[index, 1] = px - w / 2.0
            anchor_base[index, 2] = py + h / 2.0
            anchor_base[index, 3] = px + w / 2.0
    return anchor_base


def _enumerate_shifted_anchor(anchor_base, feat_stride, height, width):
    shift_y = np.arange(0, height * feat_stride, feat_stride)
    shift_x = np.arange(0, width * feat_stride, feat_stride)
    shift_x, shift_y = np.meshgrid(shift_x, shift_y)
    shift = np.stack(
        (shift_y.ravel(), shift_x.ravel(), shift_y.ravel(), shift_x.ravel()), axis=1
    )
    A = anchor_base.shape[0]
    K = shift.shape[0]
    anchor = anchor_base.reshape((1, A, 4)) + shift.reshape((1, K, 4)).transpose((1, 0, 2))
    anchor = anchor.reshape((K * A, 4)).astype(np.float32)
    return anchor


# ----------------------------------------------------------------------------
# Pallas kernel: per row-strip, fused-K im2col conv1 + ReLU + fused heads.
# ----------------------------------------------------------------------------
def _rpn_kernel(x_ref, w1_ref, b1_ref, wh_ref, bh_ref, out_ref, *, th, wp, a):
    rv = th * wp  # rows of the output slab for this strip (includes 2 pad cols)

    # bf16 strip straight from VMEM; no f32 upcast / per-tap downcast churn.
    x = x_ref[...]                                   # (rp_in, C) bf16

    # conv1 (3x3, pad 1) as ONE GEMM: build the im2col operand (rv, 9*C) in
    # VMEM by concatenating the 9 shifted tap slices along lanes.  Column
    # order is (dy*3+dx)*C + ch, matching the (9*C, mid) weight layout.
    taps = [x[dy * wp + dx: dy * wp + dx + rv, :] for dy in range(3) for dx in range(3)]
    col = jnp.concatenate(taps, axis=-1)             # (rv, 9C) bf16
    h = jnp.maximum(
        jnp.dot(col, w1_ref[...], preferred_element_type=jnp.float32) + b1_ref[...],
        0.0,
    )                                                # (rv, mid) f32

    # Fused 1x1 heads in one lane-dense (rv, 128) GEMM + single unmasked store:
    #   lanes [0:4A)      -> loc logits
    #   lanes [4A:6A)     -> score logits interleaved (bg, fg) per anchor
    #   lanes [6A:7A)     -> (fg - bg) logits, turned into fg probs in-kernel
    #   remaining lanes   -> zero pad
    head = (
        jnp.dot(h.astype(jnp.bfloat16), wh_ref[...], preferred_element_type=jnp.float32)
        + bh_ref[...]
    )
    # sigmoid(fg - bg) == softmax over the (bg, fg) pair, fg component.
    # Applied to all 128 lanes on the otherwise-idle EUP, then lane-selected.
    lane = lax.broadcasted_iota(jnp.int32, head.shape, 1)
    fg_mask = (lane >= 6 * a) & (lane < 7 * a)
    out_ref[...] = jnp.where(fg_mask, jax.nn.sigmoid(head), head)


def rpn_pallas(xs, w1m, b1, wh, bh, *, th, wp, a, vmem_limit):
    steps, rp_in, c = xs.shape
    k9, mid = w1m.shape
    assert k9 == 9 * c
    rv = th * wp

    kernel = functools.partial(_rpn_kernel, th=th, wp=wp, a=a)

    grid_spec = pltpu.PrefetchScalarGridSpec(
        num_scalar_prefetch=0,
        grid=(steps,),
        in_specs=[
            pl.BlockSpec((None, rp_in, c), lambda i: (i, 0, 0)),  # strip (pipelined)
            pl.BlockSpec((k9, mid), lambda i: (0, 0)),            # conv1 weights (resident)
            pl.BlockSpec((1, mid), lambda i: (0, 0)),             # conv1 bias
            pl.BlockSpec((mid, 128), lambda i: (0, 0)),           # fused head weights
            pl.BlockSpec((1, 128), lambda i: (0, 0)),             # fused head bias
        ],
        out_specs=pl.BlockSpec((None, rv, 128), lambda i: (i, 0, 0)),
    )
    return pl.pallas_call(
        kernel,
        grid_spec=grid_spec,
        out_shape=jax.ShapeDtypeStruct((steps, rv, 128), jnp.float32),
        compiler_params=pltpu.CompilerParams(
            dimension_semantics=("parallel",),
            vmem_limit_bytes=vmem_limit,
        ),
    )(xs, w1m, b1, wh, bh)


# ----------------------------------------------------------------------------
# Generation-aware tiling / VMEM tuning
# ----------------------------------------------------------------------------
def _tpu_tuning():
    """Per-generation strip size / VMEM cap / grid-split policy."""
    try:
        kind = jax.devices()[0].device_kind.lower()
    except Exception:  # pragma: no cover - defensive
        kind = ""
    if "v7" in kind:
        # 64 MiB physical VMEM, 2 TensorCores: smaller strips, even step count.
        return dict(vmem_limit=56 * 1024 * 1024, target_rows=640,
                    min_steps=2, step_multiple=2)
    if "v6" in kind:
        # 128 MiB VMEM, single TC: big strips, no forced splits.
        return dict(vmem_limit=96 * 1024 * 1024, target_rows=2048,
                    min_steps=1, step_multiple=1)
    if "v5" in kind:
        # v5e: 128 MiB VMEM, single TC.
        return dict(vmem_limit=96 * 1024 * 1024, target_rows=2048,
                    min_steps=1, step_multiple=1)
    # Unknown chip: conservative (safe even for 64 MiB physical VMEM).
    return dict(vmem_limit=48 * 1024 * 1024, target_rows=1024,
                min_steps=2, step_multiple=1)


def _pick_th(h, w, n, *, target_rows, min_steps, step_multiple):
    """Rows-per-strip: largest divisor of H with ~target_rows GEMM rows per
    grid step that also satisfies the (per-generation) grid-step constraints."""
    divs = sorted((d for d in range(1, h + 1) if h % d == 0), reverse=True)
    cand = [d for d in divs if d * (w + 2) <= target_rows] or [1]
    for d in cand:  # largest first
        steps = n * (h // d)
        if steps >= min_steps and steps % step_multiple == 0:
            return d
    return cand[0]  # constraints are perf hints, not correctness requirements


# ----------------------------------------------------------------------------
# Full RPN forward (glue: layout / strips / weight packing; compute: kernel)
# ----------------------------------------------------------------------------
def rpn_forward(params, x, img_size, scale=1.0, feat_stride=16):
    n, c, hh, ww = x.shape
    anchor = _enumerate_shifted_anchor(
        np.array(params["anchor_base"]), feat_stride, hh, ww
    )
    a = anchor.shape[0] // (hh * ww)
    assert 7 * a <= 128, "fused loc|score|fg head must fit one 128-lane slab"

    mid = params["w1"].shape[0]
    wp = ww + 2
    tune = _tpu_tuning()
    th = _pick_th(hh, ww, n, target_rows=tune["target_rows"],
                  min_steps=tune["min_steps"], step_multiple=tune["step_multiple"])
    nt = hh // th
    rv = th * wp

    # glue: NCHW -> NHWC, zero-pad spatially by 1, bf16, overlapping row strips
    x_nhwc = jnp.transpose(x, (0, 2, 3, 1)).astype(jnp.bfloat16)
    x_pad = jnp.pad(x_nhwc, ((0, 0), (1, 1), (1, 1), (0, 0)))
    strips = jnp.stack(
        [x_pad[:, i * th: i * th + th + 2] for i in range(nt)], axis=1
    )                                                    # (N, nt, th+2, W+2, C)
    xs = strips.reshape(n * nt, (th + 2) * wp, c)
    rp_in = ((th + 2) * wp + 2 + 7) // 8 * 8             # room for the dy=dx=2 tap
    xs = jnp.pad(xs, ((0, 0), (0, rp_in - xs.shape[1]), (0, 0)))

    # glue: weight re-layouts (from PyTorch OIHW); MXU operands in bf16
    # conv1 as a single K=9C matrix, rows ordered (dy*3+dx)*C + ch
    w1m = (
        jnp.transpose(params["w1"], (2, 3, 1, 0)).reshape(9 * c, mid).astype(jnp.bfloat16)
    )
    b1 = params["b1"][None, :].astype(jnp.float32)        # (1, mid)

    wloc_t = jnp.transpose(params["wloc"][:, :, 0, 0])    # (mid, 4A)
    wsc_t = jnp.transpose(params["wsc"][:, :, 0, 0])      # (mid, 2A), (bg,fg) per anchor
    wdiff = wsc_t[:, 1::2] - wsc_t[:, 0::2]               # (mid, A): fg - bg logit
    # fused head: [loc | scores interleaved | fg-bg diff], zero-padded to 128 lanes
    wh = jnp.concatenate([wloc_t, wsc_t, wdiff], axis=1)
    wh = jnp.pad(wh, ((0, 0), (0, 128 - wh.shape[1]))).astype(jnp.bfloat16)
    bh = jnp.concatenate(
        [params["bloc"], params["bsc"], params["bsc"][1::2] - params["bsc"][0::2]]
    )[None, :].astype(jnp.float32)
    bh = jnp.pad(bh, ((0, 0), (0, 128 - bh.shape[1])))

    # Pallas kernel: conv1 + ReLU + fused loc/score/fg head -> one dense slab
    slab = rpn_pallas(xs, w1m, b1, wh, bh, th=th, wp=wp, a=a,
                      vmem_limit=tune["vmem_limit"])      # (N*nt, rv, 128)

    # glue: drop the width-pad columns, split the lane-packed heads.
    # NOTE: wp == ww + 2 and the [:ww] slice are coupled: the last 2 output
    # columns of each flattened row mix adjacent feature rows and MUST be
    # dropped here.  Do not change one without the other.
    assert wp == ww + 2
    slab = slab.reshape(n, nt, th, wp, 128)[:, :, :, :ww, :].reshape(n, hh * ww, 128)
    rpn_locs = slab[..., : 4 * a].reshape(n, hh * ww * a, 4)
    rpn_scores = slab[..., 4 * a: 6 * a].reshape(n, hh * ww * a, 2)
    rpn_fg_scores = slab[..., 6 * a: 7 * a].reshape(n, -1)

    # TODO(synk): ProposalCreator (bbox decode + clip + score sort + NMS) is not
    # part of the provided module code; rois/roi_indices are returned empty.
    rois = np.zeros((0, 4), dtype=np.float32)
    roi_indices = np.zeros((0,), dtype=np.int32)

    return rpn_locs, rpn_scores, rois, roi_indices, anchor, rpn_fg_scores


# ----------------------------------------------------------------------------
# Plain-JAX reference (for correctness check only)
# ----------------------------------------------------------------------------
def rpn_reference(params, x):
    dn = ("NCHW", "OIHW", "NCHW")
    n, _, hh, ww = x.shape
    h = jax.nn.relu(
        lax.conv_general_dilated(x, params["w1"], (1, 1), ((1, 1), (1, 1)),
                                 dimension_numbers=dn)
        + params["b1"][None, :, None, None]
    )
    locs = (
        lax.conv_general_dilated(h, params["wloc"], (1, 1), "VALID", dimension_numbers=dn)
        + params["bloc"][None, :, None, None]
    )
    scs = (
        lax.conv_general_dilated(h, params["wsc"], (1, 1), "VALID", dimension_numbers=dn)
        + params["bsc"][None, :, None, None]
    )
    locs = jnp.transpose(locs, (0, 2, 3, 1)).reshape(n, -1, 4)
    scs_nhwc = jnp.transpose(scs, (0, 2, 3, 1))
    soft = jax.nn.softmax(scs_nhwc.reshape(n, hh, ww, -1, 2), axis=4)
    fg = soft[..., 1].reshape(n, -1)
    scs2 = scs_nhwc.reshape(n, -1, 2)
    return locs, scs2, fg


if __name__ == "__main__":
    # small shapes consistent with the module: x is (N, C, H, W)
    N, C, H, W = 2, 16, 16, 16
    MID = 32
    A = 9                       # 3 ratios x 3 scales
    FEAT_STRIDE = 16
    img_size = (H * FEAT_STRIDE, W * FEAT_STRIDE)

    key = jax.random.PRNGKey(0)
    k1, k2, k3, kx = jax.random.split(key, 4)

    # normal_init(m, 0, 0.01) with zero bias, deterministic
    params = {
        "anchor_base": generate_anchor_base(),
        "w1": 0.01 * jax.random.normal(k1, (MID, C, 3, 3), jnp.float32),
        "b1": jnp.zeros((MID,), jnp.float32),
        "wloc": 0.01 * jax.random.normal(k2, (A * 4, MID, 1, 1), jnp.float32),
        "bloc": jnp.zeros((A * 4,), jnp.float32),
        "wsc": 0.01 * jax.random.normal(k3, (A * 2, MID, 1, 1), jnp.float32),
        "bsc": jnp.zeros((A * 2,), jnp.float32),
    }
    x = jax.random.normal(kx, (N, C, H, W), jnp.float32)

    rpn_locs, rpn_scores, rois, roi_indices, anchor, rpn_fg = rpn_forward(
        params, x, img_size, scale=1.0, feat_stride=FEAT_STRIDE
    )
    jax.block_until_ready((rpn_locs, rpn_scores, rpn_fg))

    # shape checks (match the PyTorch contract)
    assert rpn_locs.shape == (N, H * W * A, 4)
    assert rpn_scores.shape == (N, H * W * A, 2)
    assert rpn_fg.shape == (N, H * W * A)
    assert anchor.shape == (H * W * A, 4)

    # numerical check against plain-JAX f32 reference (kernel runs bf16 MXU /
    # f32 accumulation, so tolerances account for bf16 input rounding)
    ref_locs, ref_scores, ref_fg = rpn_reference(params, x)
    np.testing.assert_allclose(np.asarray(rpn_locs), np.asarray(ref_locs),
                               rtol=5e-2, atol=2e-3)
    np.testing.assert_allclose(np.asarray(rpn_scores), np.asarray(ref_scores),
                               rtol=5e-2, atol=2e-3)
    np.testing.assert_allclose(np.asarray(rpn_fg), np.asarray(ref_fg),
                               rtol=5e-2, atol=2e-3)

    print("KERNEL_OK")
</pallas_src>

<mosaic_0001>
module attributes {stable_mosaic.version = 11 : i64} {
  func.func @_rpn_kernel(%arg0: i32, %arg1: memref<1x328x16xbf16, #tpu.memory_space<vmem>>, %arg2: memref<144x32xbf16, #tpu.memory_space<vmem>>, %arg3: memref<1x32xf32, #tpu.memory_space<vmem>>, %arg4: memref<32x128xbf16, #tpu.memory_space<vmem>>, %arg5: memref<1x128xf32, #tpu.memory_space<vmem>>, %arg6: memref<1x288x128xf32, #tpu.memory_space<vmem>>) attributes {dimension_semantics = [#tpu.dimension_semantics<parallel>], iteration_bounds = array<i64: 2>, scalar_prefetch = 0 : i64, scratch_operands = 0 : i64, tpu.core_type = #tpu.core_type<tc>, window_params = [{transform_indices = @transform_0, window_bounds = array<i64: 1, 328, 16>}, {pipeline_mode = #tpu.pipeline_mode<synchronous>, transform_indices = @transform_1, window_bounds = array<i64: 144, 32>}, {pipeline_mode = #tpu.pipeline_mode<synchronous>, transform_indices = @transform_2, window_bounds = array<i64: 1, 32>}, {pipeline_mode = #tpu.pipeline_mode<synchronous>, transform_indices = @transform_3, window_bounds = array<i64: 32, 128>}, {pipeline_mode = #tpu.pipeline_mode<synchronous>, transform_indices = @transform_4, window_bounds = array<i64: 1, 128>}, {transform_indices = @transform_5, window_bounds = array<i64: 1, 288, 128>}]} {
    %c0 = arith.constant 0 : index
    %c0_0 = arith.constant 0 : index
    %c0_1 = arith.constant 0 : index
    %0 = vector.load %arg1[%c0, %c0_0, %c0_1] : memref<1x328x16xbf16, #tpu.memory_space<vmem>>, vector<1x328x16xbf16>
    %1 = vector.shape_cast %0 : vector<1x328x16xbf16> to vector<328x16xbf16>
    %2 = vector.extract_strided_slice %1 {offsets = [0, 0], sizes = [288, 16], strides = [1, 1]} : vector<328x16xbf16> to vector<288x16xbf16>
    %3 = vector.extract_strided_slice %1 {offsets = [1, 0], sizes = [288, 16], strides = [1, 1]} : vector<328x16xbf16> to vector<288x16xbf16>
    %4 = vector.extract_strided_slice %1 {offsets = [2, 0], sizes = [288, 16], strides = [1, 1]} : vector<328x16xbf16> to vector<288x16xbf16>
    %5 = vector.extract_strided_slice %1 {offsets = [18, 0], sizes = [288, 16], strides = [1, 1]} : vector<328x16xbf16> to vector<288x16xbf16>
    %6 = vector.extract_strided_slice %1 {offsets = [19, 0], sizes = [288, 16], strides = [1, 1]} : vector<328x16xbf16> to vector<288x16xbf16>
    %7 = vector.extract_strided_slice %1 {offsets = [20, 0], sizes = [288, 16], strides = [1, 1]} : vector<328x16xbf16> to vector<288x16xbf16>
    %8 = vector.extract_strided_slice %1 {offsets = [36, 0], sizes = [288, 16], strides = [1, 1]} : vector<328x16xbf16> to vector<288x16xbf16>
    %9 = vector.extract_strided_slice %1 {offsets = [37, 0], sizes = [288, 16], strides = [1, 1]} : vector<328x16xbf16> to vector<288x16xbf16>
    %10 = vector.extract_strided_slice %1 {offsets = [38, 0], sizes = [288, 16], strides = [1, 1]} : vector<328x16xbf16> to vector<288x16xbf16>
    %11 = tpu.concatenate %2, %3, %4, %5, %6, %7, %8, %9, %10 in 1 : vector<288x16xbf16>, vector<288x16xbf16>, vector<288x16xbf16>, vector<288x16xbf16>, vector<288x16xbf16>, vector<288x16xbf16>, vector<288x16xbf16>, vector<288x16xbf16>, vector<288x16xbf16> -> vector<288x144xbf16>
    %c0_2 = arith.constant 0 : index
    %c0_3 = arith.constant 0 : index
    %12 = vector.load %arg2[%c0_2, %c0_3] : memref<144x32xbf16, #tpu.memory_space<vmem>>, vector<144x32xbf16>
    %cst = arith.constant dense<0.000000e+00> : vector<288x32xf32>
    %13 = tpu.matmul %11, %12, %cst {dimension_numbers = #tpu.dot_dimension_numbers<[1], [0], [0], [1], [0, 0, 1, 1], [], []>} : vector<288x144xbf16>, vector<144x32xbf16>, vector<288x32xf32> -> vector<288x32xf32>
    %c0_4 = arith.constant 0 : index
    %c0_5 = arith.constant 0 : index
    %14 = vector.load %arg3[%c0_4, %c0_5] : memref<1x32xf32, #tpu.memory_space<vmem>>, vector<1x32xf32>
    %15 = vector.broadcast %14 : vector<1x32xf32> to vector<288x32xf32>
    %16 = arith.addf %13, %15 : vector<288x32xf32>
    %cst_6 = arith.constant 0.000000e+00 : f32
    %17 = vector.broadcast %cst_6 : f32 to vector<288x32xf32>
    %18 = arith.maximumf %16, %17 : vector<288x32xf32>
    %19 = arith.truncf %18 : vector<288x32xf32> to vector<288x32xbf16>
    %c0_7 = arith.constant 0 : index
    %c0_8 = arith.constant 0 : index
    %20 = vector.load %arg4[%c0_7, %c0_8] : memref<32x128xbf16, #tpu.memory_space<vmem>>, vector<32x128xbf16>
    %cst_9 = arith.constant dense<0.000000e+00> : vector<288x128xf32>
    %21 = tpu.matmul %19, %20, %cst_9 {dimension_numbers = #tpu.dot_dimension_numbers<[1], [0], [0], [1], [0, 0, 1, 1], [], []>} : vector<288x32xbf16>, vector<32x128xbf16>, vector<288x128xf32> -> vector<288x128xf32>
    %c0_10 = arith.constant 0 : index
    %c0_11 = arith.constant 0 : index
    %22 = vector.load %arg5[%c0_10, %c0_11] : memref<1x128xf32, #tpu.memory_space<vmem>>, vector<1x128xf32>
    %23 = vector.broadcast %22 : vector<1x128xf32> to vector<288x128xf32>
    %24 = arith.addf %21, %23 : vector<288x128xf32>
    %25 = tpu.iota {dimensions = array<i32: 1>} : vector<288x128xi32>
    %c54_i32 = arith.constant 54 : i32
    %26 = vector.broadcast %c54_i32 : i32 to vector<288x128xi32>
    %27 = arith.cmpi sge, %25, %26 : vector<288x128xi32>
    %c63_i32 = arith.constant 63 : i32
    %28 = vector.broadcast %c63_i32 : i32 to vector<288x128xi32>
    %29 = arith.cmpi slt, %25, %28 : vector<288x128xi32>
    %30 = arith.andi %27, %29 : vector<288x128xi1>
    %31 = arith.negf %24 : vector<288x128xf32>
    %32 = math.exp %31 : vector<288x128xf32>
    %cst_12 = arith.constant 1.000000e+00 : f32
    %33 = vector.broadcast %cst_12 : f32 to vector<288x128xf32>
    %34 = arith.addf %33, %32 : vector<288x128xf32>
    %35 = arith.divf %33, %34 : vector<288x128xf32>
    %36 = arith.select %30, %35, %24 : vector<288x128xi1>, vector<288x128xf32>
    %c0_13 = arith.constant 0 : index
    %c0_14 = arith.constant 0 : index
    %c0_15 = arith.constant 0 : index
    %37 = vector.load %arg6[%c0_13, %c0_14, %c0_15] : memref<1x288x128xf32, #tpu.memory_space<vmem>>, vector<1x288x128xf32>
    %38 = vector.shape_cast %37 : vector<1x288x128xf32> to vector<288x128xf32>
    %39 = vector.shape_cast %36 : vector<288x128xf32> to vector<1x288x128xf32>
    tpu.vector_store %arg6[%c0_13, %c0_14, %c0_15], %39 {strides = array<i32>} : memref<1x288x128xf32, #tpu.memory_space<vmem>>, vector<1x288x128xf32>,
    return
  }
  func.func @transform_0(%arg0: i32) -> (i32, i32, i32) {
    %c0_i32 = arith.constant 0 : i32
    %c0_i32_0 = arith.constant 0 : i32
    %c0_i32_1 = arith.constant 0 : i32
    return %arg0, %c0_i32, %c0_i32_0 : i32, i32, i32
  }
  func.func @transform_1(%arg0: i32) -> (i32, i32) {
    %c0_i32 = arith.constant 0 : i32
    %c0_i32_0 = arith.constant 0 : i32
    %c0_i32_1 = arith.constant 0 : i32
    return %c0_i32, %c0_i32_0 : i32, i32
  }
  func.func @transform_2(%arg0: i32) -> (i32, i32) {
    %c0_i32 = arith.constant 0 : i32
    %c0_i32_0 = arith.constant 0 : i32
    %c0_i32_1 = arith.constant 0 : i32
    return %c0_i32, %c0_i32_0 : i32, i32
  }
  func.func @transform_3(%arg0: i32) -> (i32, i32) {
    %c0_i32 = arith.constant 0 : i32
    %c0_i32_0 = arith.constant 0 : i32
    %c0_i32_1 = arith.constant 0 : i32
    return %c0_i32, %c0_i32_0 : i32, i32
  }
  func.func @transform_4(%arg0: i32) -> (i32, i32) {
    %c0_i32 = arith.constant 0 : i32
    %c0_i32_0 = arith.constant 0 : i32
    %c0_i32_1 = arith.constant 0 : i32
    return %c0_i32, %c0_i32_0 : i32, i32
  }
  func.func @transform_5(%arg0: i32) -> (i32, i32, i32) {
    %c0_i32 = arith.constant 0 : i32
    %c0_i32_0 = arith.constant 0 : i32
    %c0_i32_1 = arith.constant 0 : i32
    return %arg0, %c0_i32, %c0_i32_0 : i32, i32, i32
  }
}

</mosaic_0001>

<llo_original>
// kernel: tpu_custom_call.1
$region0: #{tpu_custom_call.1}
  #allocation0 [shape = 'u32[]', space=smem, size = 0x4, offset = 0x4, fixed_abs, tag = 'smem constant byte address 0x4 - core index']
  #allocation1 [shape = 'u32[144,128]{1,0:T(1,128)}', space=vmem, size = 0x12000, scoped, tag = 'internal scratch']
  %s0 = inlined_call_operand.vmem [shape: bf16[2,328,16], index: 0, kind: input, shape index: {}]
  %s1 = inlined_call_operand.vmem [shape: bf16[144,32], index: 1, kind: input, shape index: {}]
  %s2 = inlined_call_operand.vmem [shape: f32[1,32], index: 2, kind: input, shape index: {}]
  %s3 = inlined_call_operand.vmem [shape: bf16[32,128], index: 3, kind: input, shape index: {}]
  %s4 = inlined_call_operand.vmem [shape: f32[1,128], index: 4, kind: input, shape index: {}]
  %s5 = inlined_call_operand.hbm [shape: f32[2,288,128], index: 5, kind: output, shape index: {}]
  %s6 = sld [smem:[#allocation0]]
  $region53: #{tpu_custom_call.1} parent=0
    _
  %s8 = ssub.s32 1, %s6
  %s9 = scalar_select 0, %s8, %s6
  $region1: #{tpu_custom_call.1} parent=0
    #allocation2 [shape = 'u8[294912]{0}', space=vmem, size = 0x48000, scoped, tag = 'output window, operand 0']
    #allocation3 [shape = 's32[2]{0}', space=sflag, size = 0x8, scoped, tag = 'scoped memory for tpu_custom_call.1']
    %10 = vsyncpa [#allocation3], 0
    %s11 = scalar_lea.sflag [#allocation3], 1
    %12 = vsyncpa %s11, 0
    loop: start=0, step=1, limit=4
    $region2: #{tpu_custom_call.1} parent=1 // loop_pre_header
      _
    $region3: #{tpu_custom_call.1} parent=1 // loop_header
      %s14 = sphi 0, %s18
      %p15 = scmp.ge.s32.totalorder %s14, 4
      %s24 = sphi 0, %s26
      %s27 = sphi 0, %s24
      %s28 = sphi 0, %s27
      %s44 = sphi 0, %s28
      %s48 = sphi 0, %s48
      %s50 = sphi 0, %s48
      %s51 = sphi 0, %s50
      %s65 = sphi 0, %s51
      %s69 = sphi 0, %s69
      %s71 = sphi 0, %s69
      %s72 = sphi 0, %s71
      %s86 = sphi 0, %s72
      %s90 = sphi 0, %s90
      %s92 = sphi 0, %s90
      %s93 = sphi 0, %s92
      %s107 = sphi 0, %s93
      %s111 = sphi 0, %s111
      %s113 = sphi 0, %s111
      %s114 = sphi 0, %s113
      %s128 = sphi 0, %s114
      %s134 = sphi 0, %s136
      %s137 = sphi 0, %s134
      %s138 = sphi 0, %s137
      %s154 = sphi 0, %s138
    $region4: #{tpu_custom_call.1} parent=1 // loop_header_branch
      %17 = sbr.rel (%p15) target = $region8
    $region5: #{tpu_custom_call.1} parent=1 // loop_body
      %s19 = ssub.s32 %s14, 1
      %s20 = ssub.s32 %s14, 2
      %s21 = sadd.s32 %s14, 1
      %s22 = ssub.s32 %s14, %s21
      %p23 = scmp.eq.s32.totalorder %s22, 0
      %s25 = sadd.s32 %s24, 1
      %s26 = scalar_select %p23, %s24, %s25
      %p29 = pneg %p23
      %p30 = scmp.eq.s32.totalorder %s14, 1
      %p31 = por %p29, %p30
      %p32 = scmp.ne.s32.totalorder %s24, %s27
      %p33 = scmp.eq.s32.totalorder %s14, 0
      %p34 = por %p32, %p33
      %p35 = scmp.ne.s32.totalorder %s24, %s27
      %p36 = scmp.eq.s32.totalorder %s19, 1
      %p37 = por %p35, %p36
      %p38 = scmp.ne.s32.totalorder %s27, %s28
      %p39 = scmp.eq.s32.totalorder %s19, 0
      %p40 = por %p38, %p39
      %p41 = scmp.ne.s32.totalorder %s27, %s28
      %p42 = scmp.eq.s32.totalorder %s20, 1
      %p43 = por %p41, %p42
      %p45 = scmp.ne.s32.totalorder %s28, %s44
      %p46 = scmp.eq.s32.totalorder %s20, 0
      %p47 = por %p45, %p46
      %s49 = sadd.s32 %s48, 1
      %p52 = scmp.eq.s32.totalorder %s14, 1
      %p53 = scmp.ne.s32.totalorder %s48, %s50
      %p54 = scmp.eq.s32.totalorder %s14, 0
      %p55 = por %p53, %p54
      %p56 = scmp.ne.s32.totalorder %s48, %s50
      %p57 = scmp.eq.s32.totalorder %s19, 1
      %p58 = por %p56, %p57
      %p59 = scmp.ne.s32.totalorder %s50, %s51
      %p60 = scmp.eq.s32.totalorder %s19, 0
      %p61 = por %p59, %p60
      %p62 = scmp.ne.s32.totalorder %s50, %s51
      %p63 = scmp.eq.s32.totalorder %s20, 1
      %p64 = por %p62, %p63
      %p66 = scmp.ne.s32.totalorder %s51, %s65
      %p67 = scmp.eq.s32.totalorder %s20, 0
      %p68 = por %p66, %p67
      %s70 = sadd.s32 %s69, 1
      %p73 = scmp.eq.s32.totalorder %s14, 1
      %p74 = scmp.ne.s32.totalorder %s69, %s71
      %p75 = scmp.eq.s32.totalorder %s14, 0
      %p76 = por %p74, %p75
      %p77 = scmp.ne.s32.totalorder %s69, %s71
      %p78 = scmp.eq.s32.totalorder %s19, 1
      %p79 = por %p77, %p78
      %p80 = scmp.ne.s32.totalorder %s71, %s72
      %p81 = scmp.eq.s32.totalorder %s19, 0
      %p82 = por %p80, %p81
      %p83 = scmp.ne.s32.totalorder %s71, %s72
      %p84 = scmp.eq.s32.totalorder %s20, 1
      %p85 = por %p83, %p84
      %p87 = scmp.ne.s32.totalorder %s72, %s86
      %p88 = scmp.eq.s32.totalorder %s20, 0
      %p89 = por %p87, %p88
      %s91 = sadd.s32 %s90, 1
      %p94 = scmp.eq.s32.totalorder %s14, 1
      %p95 = scmp.ne.s32.totalorder %s90, %s92
      %p96 = scmp.eq.s32.totalorder %s14, 0
      %p97 = por %p95, %p96
      %p98 = scmp.ne.s32.totalorder %s90, %s92
      %p99 = scmp.eq.s32.totalorder %s19, 1
      %p100 = por %p98, %p99
      %p101 = scmp.ne.s32.totalorder %s92, %s93
      %p102 = scmp.eq.s32.totalorder %s19, 0
      %p103 = por %p101, %p102
      %p104 = scmp.ne.s32.totalorder %s92, %s93
      %p105 = scmp.eq.s32.totalorder %s20, 1
      %p106 = por %p104, %p105
      %p108 = scmp.ne.s32.totalorder %s93, %s107
      %p109 = scmp.eq.s32.totalorder %s20, 0
      %p110 = por %p108, %p109
      %s112 = sadd.s32 %s111, 1
      %p115 = scmp.eq.s32.totalorder %s14, 1
      %p116 = scmp.ne.s32.totalorder %s111, %s113
      %p117 = scmp.eq.s32.totalorder %s14, 0
      %p118 = por %p116, %p117
      %p119 = scmp.ne.s32.totalorder %s111, %s113
      %p120 = scmp.eq.s32.totalorder %s19, 1
      %p121 = por %p119, %p120
      %p122 = scmp.ne.s32.totalorder %s113, %s114
      %p123 = scmp.eq.s32.totalorder %s19, 0
      %p124 = por %p122, %p123
      %p125 = scmp.ne.s32.totalorder %s113, %s114
      %p126 = scmp.eq.s32.totalorder %s20, 1
      %p127 = por %p125, %p126
      %p129 = scmp.ne.s32.totalorder %s114, %s128
      %p130 = scmp.eq.s32.totalorder %s20, 0
      %p131 = por %p129, %p130
      %s132 = ssub.s32 %s14, %s21
      %p133 = scmp.eq.s32.totalorder %s132, 0
      %s135 = sadd.s32 %s134, 1
      %s136 = scalar_select %p133, %s134, %s135
      %p139 = pneg %p133
      %p140 = scmp.eq.s32.totalorder %s14, 1
      %p141 = por %p139, %p140
      %p142 = scmp.ne.s32.totalorder %s134, %s137
      %p143 = scmp.eq.s32.totalorder %s14, 0
      %p144 = por %p142, %p143
      %p145 = scmp.ne.s32.totalorder %s134, %s137
      %p146 = scmp.eq.s32.totalorder %s19, 1
      %p147 = por %p145, %p146
      %p148 = scmp.ne.s32.totalorder %s137, %s138
      %p149 = scmp.eq.s32.totalorder %s19, 0
      %p150 = por %p148, %p149
      %p151 = scmp.ne.s32.totalorder %s137, %s138
      %p152 = scmp.eq.s32.totalorder %s20, 1
      %p153 = por %p151, %p152
      %p155 = scmp.ne.s32.totalorder %s138, %s154
      %p156 = scmp.eq.s32.totalorder %s20, 0
      %p157 = por %p155, %p156
      %p158 = scmp.le.s32.totalorder 1, %s14
      %p159 = scmp.lt.s32.totalorder %s14, 3
      %p160 = pnand %p158, %p159
      %p161 = pneg %p160
      // Predicated region
      $region9: #{tpu_custom_call.1} parent=5 // pred_check
        _
      $region10: #{tpu_custom_call.1} parent=5 // pred_check_branch
        %163 = sbr.rel (%p160) target = $region12
      $region11: #{tpu_custom_call.1} parent=5 // pred_region
        %s164 = ssub.s32 %s14, 1
        // Predicated region
        $region13: #{tpu_custom_call.1} parent=11 // pred_check
          %p165 = pneg %p61
        $region14: #{tpu_custom_call.1} parent=11 // pred_check_branch
          %167 = sbr.rel (%p165) target = $region16
        $region15: #{tpu_custom_call.1} parent=11 // pred_region
          _
        $region16: #{tpu_custom_call.1} parent=11 // pred_fallthru
          _
        // Predicated region
        $region17: #{tpu_custom_call.1} parent=11 // pred_check
          %p168 = pneg %p82
        $region18: #{tpu_custom_call.1} parent=11 // pred_check_branch
          %170 = sbr.rel (%p168) target = $region20
        $region19: #{tpu_custom_call.1} parent=11 // pred_region
          _
        $region20: #{tpu_custom_call.1} parent=11 // pred_fallthru
          _
        // Predicated region
        $region21: #{tpu_custom_call.1} parent=11 // pred_check
          %p171 = pneg %p103
        $region22: #{tpu_custom_call.1} parent=11 // pred_check_branch
          %173 = sbr.rel (%p171) target = $region24
        $region23: #{tpu_custom_call.1} parent=11 // pred_region
          _
        $region24: #{tpu_custom_call.1} parent=11 // pred_fallthru
          _
        // Predicated region
        $region25: #{tpu_custom_call.1} parent=11 // pred_check
          %p174 = pneg %p124
        $region26: #{tpu_custom_call.1} parent=11 // pred_check_branch
          %176 = sbr.rel (%p174) target = $region28
        $region27: #{tpu_custom_call.1} parent=11 // pred_region
          _
        $region28: #{tpu_custom_call.1} parent=11 // pred_fallthru
          _
      $region12: #{tpu_custom_call.1} parent=5 // pred_fallthru
        _
      %p177 = scmp.lt.s32.totalorder %s14, 2
      // Predicated region
      $region29: #{tpu_custom_call.1} parent=5 // pred_check
        %p178 = pneg %p177
      $region30: #{tpu_custom_call.1} parent=5 // pred_check_branch
        %180 = sbr.rel (%p178) target = $region32
      $region31: #{tpu_custom_call.1} parent=5 // pred_region
        // Predicated region
        $region33: #{tpu_custom_call.1} parent=31 // pred_check
          %p181 = pneg %p34
        $region34: #{tpu_custom_call.1} parent=31 // pred_check_branch
          %183 = sbr.rel (%p181) target = $region36
        $region35: #{tpu_custom_call.1} parent=31 // pred_region
          %p184 = scmp.lt.s32.totalorder %s14, 1
          %s185 = scalar_select %p184, %s14, 1
          %s186 = smul.addr %s185, 41
          %s187 = smul.addr %s186, 4
          %s188 = scalar_lea.vmem %s0, %s187
        $region36: #{tpu_custom_call.1} parent=31 // pred_fallthru
          _
      $region32: #{tpu_custom_call.1} parent=5 // pred_fallthru
        _
      %p189 = scmp.le.s32.totalorder 1, %s14
      %p190 = scmp.lt.s32.totalorder %s14, 3
      %p191 = pnand %p189, %p190
      %p192 = pneg %p191
      // Predicated region
      $region37: #{tpu_custom_call.1} parent=5 // pred_check
        _
      $region38: #{tpu_custom_call.1} parent=5 // pred_check_branch
        %194 = sbr.rel (%p191) target = $region40
      $region39: #{tpu_custom_call.1} parent=5 // pred_region
        %s195 = ssub.s32 %s14, 1
        %p196 = scmp.lt.s32.totalorder %s19, 1
        %s197 = scalar_select %p196, %s19, 1
        %s198 = smul.addr %s197, 41
        %s199 = smul.addr %s198, 4
        %s200 = scalar_lea.vmem %s0, %s199
        %p201 = pneg %p40
        %p202 = pneg %p37
        %p203 = pneg %p61
        %p204 = pneg %p58
        %p205 = pneg %p82
        %p206 = pneg %p79
        %p207 = pneg %p103
        %p208 = pneg %p100
        %p209 = pneg %p124
        %p210 = pneg %p121
        %p211 = pneg %p150
        %p212 = pneg %p147
        %s213 = sand.u32 %s137, 1
        %s214 = scalar_lea.sflag [#allocation3], %s213
        %s215 = sand.u32 %s137, 1
        %s216 = smul.addr %s215, 288
        %s217 = scalar_lea.vmem [#allocation2], %s216
        %p218 = scmp.lt.s32.totalorder %s19, 1
        %s219 = scalar_select %p218, %s19, 1
        %s220 = smul.addr %s219, 41
        %s221 = smul.addr %s220, 4
        %s222 = scalar_lea.vmem %s0, %s221
        %v224 = vld [vmem:[%s222] sm:$0xf]
        %v225 = vld [vmem:[%s222 + $0x4] sm:$0xf]
        %v226 = vld [vmem:[%s222 + $0x8] sm:$0xf]
        %v227 = vld [vmem:[%s222 + $0xc] sm:$0xf]
        %v228 = vld [vmem:[%s222 + $0x10] sm:$0xf]
        %v229 = vld [vmem:[%s222 + $0x14] sm:$0xf]
        %v230 = vld [vmem:[%s222 + $0x18] sm:$0xf]
        %v231 = vld [vmem:[%s222 + $0x1c] sm:$0xf]
        %v232 = vld [vmem:[%s222 + $0x20] sm:$0xf]
        %v233 = vld [vmem:[%s222 + $0x24] sm:$0xf]
        %v234 = vld [vmem:[%s222 + $0x28] sm:$0xf]
        %v235 = vld [vmem:[%s222 + $0x2c] sm:$0xf]
        %v236 = vld [vmem:[%s222 + $0x30] sm:$0xf]
        %v237 = vld [vmem:[%s222 + $0x34] sm:$0xf]
        %v238 = vld [vmem:[%s222 + $0x38] sm:$0xf]
        %v239 = vld [vmem:[%s222 + $0x3c] sm:$0xf]
        %v240 = vld [vmem:[%s222 + $0x40] sm:$0xf]
        %v241 = vld [vmem:[%s222 + $0x44] sm:$0xf]
        %v242 = vld [vmem:[%s222 + $0x48] sm:$0xf]
        %v243 = vld [vmem:[%s222 + $0x4c] sm:$0xf]
        %v244 = vld [vmem:[%s222 + $0x50] sm:$0xf]
        %v245 = vld [vmem:[%s222 + $0x54] sm:$0xf]
        %v246 = vld [vmem:[%s222 + $0x58] sm:$0xf]
        %v247 = vld [vmem:[%s222 + $0x5c] sm:$0xf]
        %v248 = vld [vmem:[%s222 + $0x60] sm:$0xf]
        %v249 = vld [vmem:[%s222 + $0x64] sm:$0xf]
        %v250 = vld [vmem:[%s222 + $0x68] sm:$0xf]
        %v251 = vld [vmem:[%s222 + $0x6c] sm:$0xf]
        %v252 = vld [vmem:[%s222 + $0x70] sm:$0xf]
        %v253 = vld [vmem:[%s222 + $0x74] sm:$0xf]
        %v254 = vld [vmem:[%s222 + $0x78] sm:$0xf]
        %v255 = vld [vmem:[%s222 + $0x7c] sm:$0xf]
        %v256 = vld [vmem:[%s222 + $0x80] sm:$0xf]
        %v257 = vld [vmem:[%s222 + $0x84] sm:$0xf]
        %v258 = vld [vmem:[%s222 + $0x88] sm:$0xf]
        %v259 = vld [vmem:[%s222 + $0x8c] sm:$0xf]
        %v260 = vld [vmem:[%s222 + $0x90] sm:$0xf]
        %v261 = vld [vmem:[%s222 + $0x94] sm:$0xf]
        %v262 = vld [vmem:[%s222 + $0x98] sm:$0xf]
        %v263 = vld [vmem:[%s222 + $0x9c] sm:$0xf]
        %v264 = vld [vmem:[%s222 + $0xa0] sm:$0xf]
        %v301 = vunpack.c.l.b16 %v224
        %v302 = vunpack.c.l.b16 %v225
        %v303 = vunpack.c.l.b16 %v226
        %v304 = vunpack.c.l.b16 %v227
        %v305 = vunpack.c.l.b16 %v228
        %v306 = vunpack.c.l.b16 %v229
        %v307 = vunpack.c.l.b16 %v230
        %v308 = vunpack.c.l.b16 %v231
        %v309 = vunpack.c.l.b16 %v232
        %v310 = vunpack.c.l.b16 %v233
        %v311 = vunpack.c.l.b16 %v234
        %v312 = vunpack.c.l.b16 %v235
        %v313 = vunpack.c.l.b16 %v236
        %v314 = vunpack.c.l.b16 %v237
        %v315 = vunpack.c.l.b16 %v238
        %v316 = vunpack.c.l.b16 %v239
        %v317 = vunpack.c.l.b16 %v240
        %v318 = vunpack.c.l.b16 %v241
        %v319 = vunpack.c.l.b16 %v242
        %v320 = vunpack.c.l.b16 %v243
        %v321 = vunpack.c.l.b16 %v244
        %v322 = vunpack.c.l.b16 %v245
        %v323 = vunpack.c.l.b16 %v246
        %v324 = vunpack.c.l.b16 %v247
        %v325 = vunpack.c.l.b16 %v248
        %v326 = vunpack.c.l.b16 %v249
        %v327 = vunpack.c.l.b16 %v250
        %v328 = vunpack.c.l.b16 %v251
        %v329 = vunpack.c.l.b16 %v252
        %v330 = vunpack.c.l.b16 %v253
        %v331 = vunpack.c.l.b16 %v254
        %v332 = vunpack.c.l.b16 %v255
        %v333 = vunpack.c.l.b16 %v256
        %v334 = vunpack.c.l.b16 %v257
        %v335 = vunpack.c.l.b16 %v258
        %v336 = vunpack.c.l.b16 %v259
        %v337 = vpack.c.b16 %v302, %v301
        %v338 = vpack.c.b16 %v304, %v303
        %v339 = vpack.c.b16 %v306, %v305
        %v340 = vpack.c.b16 %v308, %v307
        %v341 = vpack.c.b16 %v310, %v309
        %v342 = vpack.c.b16 %v312, %v311
        %v343 = vpack.c.b16 %v314, %v313
        %v344 = vpack.c.b16 %v316, %v315
        %v345 = vpack.c.b16 %v318, %v317
        %v346 = vpack.c.b16 %v320, %v319
        %v347 = vpack.c.b16 %v322, %v321
        %v348 = vpack.c.b16 %v324, %v323
        %v349 = vpack.c.b16 %v326, %v325
        %v350 = vpack.c.b16 %v328, %v327
        %v351 = vpack.c.b16 %v330, %v329
        %v352 = vpack.c.b16 %v332, %v331
        %v353 = vpack.c.b16 %v334, %v333
        %v354 = vpack.c.b16 %v336, %v335
        %v356 = vunpack.c.l.b16 %v260
        %v357 = vpack.c.b16 %v356, %v356
        %vm358 = vsmask.f32 7424
        %v360 = vshrl.u32 %v337, 16
        %v362 = vshll.u32 %v337, 16
        %v364 = vrot.slane %v362, 1
        %v365 = vor.u32 %v360, %v364
        %v367 = vshll.u32 %v338, 16
        %v369 = vrot.slane %v367, 1
        %v370 = vsel %vm358, %v365, %v369
        %v371 = vshrl.u32 %v338, 16
        %v373 = vor.u32 %v371, %v369
        %v375 = vshll.u32 %v339, 16
        %v377 = vrot.slane %v375, 1
        %v378 = vsel %vm358, %v373, %v377
        %v379 = vshrl.u32 %v339, 16
        %v381 = vor.u32 %v379, %v377
        %v383 = vshll.u32 %v340, 16
        %v385 = vrot.slane %v383, 1
        %v386 = vsel %vm358, %v381, %v385
        %v387 = vshrl.u32 %v340, 16
        %v389 = vor.u32 %v387, %v385
        %v391 = vshll.u32 %v341, 16
        %v393 = vrot.slane %v391, 1
        %v394 = vsel %vm358, %v389, %v393
        %v395 = vshrl.u32 %v341, 16
        %v397 = vor.u32 %v395, %v393
        %v399 = vshll.u32 %v342, 16
        %v401 = vrot.slane %v399, 1
        %v402 = vsel %vm358, %v397, %v401
        %v403 = vshrl.u32 %v342, 16
        %v405 = vor.u32 %v403, %v401
        %v407 = vshll.u32 %v343, 16
        %v409 = vrot.slane %v407, 1
        %v410 = vsel %vm358, %v405, %v409
        %v411 = vshrl.u32 %v343, 16
        %v413 = vor.u32 %v411, %v409
        %v415 = vshll.u32 %v344, 16
        %v417 = vrot.slane %v415, 1
        %v418 = vsel %vm358, %v413, %v417
        %v419 = vshrl.u32 %v344, 16
        %v421 = vor.u32 %v419, %v417
        %v423 = vshll.u32 %v345, 16
        %v425 = vrot.slane %v423, 1
        %v426 = vsel %vm358, %v421, %v425
        %v427 = vshrl.u32 %v345, 16
        %v429 = vor.u32 %v427, %v425
        %v431 = vshll.u32 %v346, 16
        %v433 = vrot.slane %v431, 1
        %v434 = vsel %vm358, %v429, %v433
        %v435 = vshrl.u32 %v346, 16
        %v437 = vor.u32 %v435, %v433
        %v439 = vshll.u32 %v347, 16
        %v441 = vrot.slane %v439, 1
        %v442 = vsel %vm358, %v437, %v441
        %v443 = vshrl.u32 %v347, 16
        %v445 = vor.u32 %v443, %v441
        %v447 = vshll.u32 %v348, 16
        %v449 = vrot.slane %v447, 1
        %v450 = vsel %vm358, %v445, %v449
        %v451 = vshrl.u32 %v348, 16
        %v453 = vor.u32 %v451, %v449
        %v455 = vshll.u32 %v349, 16
        %v457 = vrot.slane %v455, 1
        %v458 = vsel %vm358, %v453, %v457
        %v459 = vshrl.u32 %v349, 16
        %v461 = vor.u32 %v459, %v457
        %v463 = vshll.u32 %v350, 16
        %v465 = vrot.slane %v463, 1
        %v466 = vsel %vm358, %v461, %v465
        %v467 = vshrl.u32 %v350, 16
        %v469 = vor.u32 %v467, %v465
        %v471 = vshll.u32 %v351, 16
        %v473 = vrot.slane %v471, 1
        %v474 = vsel %vm358, %v469, %v473
        %v475 = vshrl.u32 %v351, 16
        %v477 = vor.u32 %v475, %v473
        %v479 = vshll.u32 %v352, 16
        %v481 = vrot.slane %v479, 1
        %v482 = vsel %vm358, %v477, %v481
        %v483 = vshrl.u32 %v352, 16
        %v485 = vor.u32 %v483, %v481
        %v487 = vshll.u32 %v353, 16
        %v489 = vrot.slane %v487, 1
        %v490 = vsel %vm358, %v485, %v489
        %v491 = vshrl.u32 %v353, 16
        %v493 = vor.u32 %v491, %v489
        %v495 = vshll.u32 %v354, 16
        %v497 = vrot.slane %v495, 1
        %v498 = vsel %vm358, %v493, %v497
        %v499 = vshrl.u32 %v354, 16
        %v501 = vor.u32 %v499, %v497
        %v503 = vshll.u32 %v357, 16
        %v505 = vrot.slane %v503, 1
        %v506 = vsel %vm358, %v501, %v505
        %507 = vrot.lane.b32.xlu0 %v370, 16
        %v508 = vpop.permute.xlu0 %507
        %509 = vrot.lane.b32.xlu0 %v378, 16
        %v510 = vpop.permute.xlu0 %509
        %511 = vrot.lane.b32.xlu0 %v386, 16
        %v512 = vpop.permute.xlu0 %511
        %513 = vrot.lane.b32.xlu0 %v394, 16
        %v514 = vpop.permute.xlu0 %513
        %515 = vrot.lane.b32.xlu0 %v402, 16
        %v516 = vpop.permute.xlu0 %515
        %517 = vrot.lane.b32.xlu0 %v410, 16
        %v518 = vpop.permute.xlu0 %517
        %519 = vrot.lane.b32.xlu0 %v418, 16
        %v520 = vpop.permute.xlu0 %519
        %521 = vrot.lane.b32.xlu0 %v426, 16
        %v522 = vpop.permute.xlu0 %521
        %523 = vrot.lane.b32.xlu0 %v434, 16
        %v524 = vpop.permute.xlu0 %523
        %525 = vrot.lane.b32.xlu0 %v442, 16
        %v526 = vpop.permute.xlu0 %525
        %527 = vrot.lane.b32.xlu0 %v450, 16
        %v528 = vpop.permute.xlu0 %527
        %529 = vrot.lane.b32.xlu0 %v458, 16
        %v530 = vpop.permute.xlu0 %529
        %531 = vrot.lane.b32.xlu0 %v466, 16
        %v532 = vpop.permute.xlu0 %531
        %533 = vrot.lane.b32.xlu0 %v474, 16
        %v534 = vpop.permute.xlu0 %533
        %535 = vrot.lane.b32.xlu0 %v482, 16
        %v536 = vpop.permute.xlu0 %535
        %537 = vrot.lane.b32.xlu0 %v490, 16
        %v538 = vpop.permute.xlu0 %537
        %539 = vrot.lane.b32.xlu0 %v498, 16
        %v540 = vpop.permute.xlu0 %539
        %541 = vrot.lane.b32.xlu0 %v506, 16
        %v542 = vpop.permute.xlu0 %541
        %vm543 = vcmask 1046528
        %v544 = vrot.slane %v337, 1
        %v545 = vrot.slane %v338, 1
        %v546 = vsel %vm543, %v544, %v545
        %v547 = vrot.slane %v339, 1
        %v548 = vsel %vm543, %v545, %v547
        %v549 = vrot.slane %v340, 1
        %v550 = vsel %vm543, %v547, %v549
        %v551 = vrot.slane %v341, 1
        %v552 = vsel %vm543, %v549, %v551
        %v553 = vrot.slane %v342, 1
        %v554 = vsel %vm543, %v551, %v553
        %v555 = vrot.slane %v343, 1
        %v556 = vsel %vm543, %v553, %v555
        %v557 = vrot.slane %v344, 1
        %v558 = vsel %vm543, %v555, %v557
        %v559 = vrot.slane %v345, 1
        %v560 = vsel %vm543, %v557, %v559
        %v561 = vrot.slane %v346, 1
        %v562 = vsel %vm543, %v559, %v561
        %v563 = vrot.slane %v347, 1
        %v564 = vsel %vm543, %v561, %v563
        %v565 = vrot.slane %v348, 1
        %v566 = vsel %vm543, %v563, %v565
        %v567 = vrot.slane %v349, 1
        %v568 = vsel %vm543, %v565, %v567
        %v569 = vrot.slane %v350, 1
        %v570 = vsel %vm543, %v567, %v569
        %v571 = vrot.slane %v351, 1
        %v572 = vsel %vm543, %v569, %v571
        %v573 = vrot.slane %v352, 1
        %v574 = vsel %vm543, %v571, %v573
        %v575 = vrot.slane %v353, 1
        %v576 = vsel %vm543, %v573, %v575
        %v577 = vrot.slane %v354, 1
        %v578 = vsel %vm543, %v575, %v577
        %v579 = vrot.slane %v357, 1
        %v580 = vsel %vm543, %v577, %v579
        %581 = vrot.lane.b32.xlu0 %v546, 32
        %v582 = vpop.permute.xlu0 %581
        %583 = vrot.lane.b32.xlu0 %v548, 32
        %v584 = vpop.permute.xlu0 %583
        %585 = vrot.lane.b32.xlu0 %v550, 32
        %v586 = vpop.permute.xlu0 %585
        %587 = vrot.lane.b32.xlu0 %v552, 32
        %v588 = vpop.permute.xlu0 %587
        %589 = vrot.lane.b32.xlu0 %v554, 32
        %v590 = vpop.permute.xlu0 %589
        %591 = vrot.lane.b32.xlu0 %v556, 32
        %v592 = vpop.permute.xlu0 %591
        %593 = vrot.lane.b32.xlu0 %v558, 32
        %v594 = vpop.permute.xlu0 %593
        %595 = vrot.lane.b32.xlu0 %v560, 32
        %v596 = vpop.permute.xlu0 %595
        %597 = vrot.lane.b32.xlu0 %v562, 32
        %v598 = vpop.permute.xlu0 %597
        %599 = vrot.lane.b32.xlu0 %v564, 32
        %v600 = vpop.permute.xlu0 %599
        %601 = vrot.lane.b32.xlu0 %v566, 32
        %v602 = vpop.permute.xlu0 %601
        %603 = vrot.lane.b32.xlu0 %v568, 32
        %v604 = vpop.permute.xlu0 %603
        %605 = vrot.lane.b32.xlu0 %v570, 32
        %v606 = vpop.permute.xlu0 %605
        %607 = vrot.lane.b32.xlu0 %v572, 32
        %v608 = vpop.permute.xlu0 %607
        %609 = vrot.lane.b32.xlu0 %v574, 32
        %v610 = vpop.permute.xlu0 %609
        %611 = vrot.lane.b32.xlu0 %v576, 32
        %v612 = vpop.permute.xlu0 %611
        %613 = vrot.lane.b32.xlu0 %v578, 32
        %v614 = vpop.permute.xlu0 %613
        %615 = vrot.lane.b32.xlu0 %v580, 32
        %v616 = vpop.permute.xlu0 %615
        %v619 = vunpack.c.l.b16 %v261
        %v620 = vunpack.c.l.b16 %v262
        %v621 = vpack.c.b16 %v619, %v356
        %v622 = vpack.c.b16 %v620, %v620
        %v623 = vrot.slane %v621, 1
        %v624 = vsel %vm543, %v577, %v623
        %v625 = vrot.slane %v622, 1
        %v626 = vsel %vm543, %v623, %v625
        %627 = vrot.lane.b32.xlu0 %v548, 48
        %v628 = vpop.permute.xlu0 %627
        %629 = vrot.lane.b32.xlu0 %v550, 48
        %v630 = vpop.permute.xlu0 %629
        %631 = vrot.lane.b32.xlu0 %v552, 48
        %v632 = vpop.permute.xlu0 %631
        %633 = vrot.lane.b32.xlu0 %v554, 48
        %v634 = vpop.permute.xlu0 %633
        %635 = vrot.lane.b32.xlu0 %v556, 48
        %v636 = vpop.permute.xlu0 %635
        %637 = vrot.lane.b32.xlu0 %v558, 48
        %v638 = vpop.permute.xlu0 %637
        %639 = vrot.lane.b32.xlu0 %v560, 48
        %v640 = vpop.permute.xlu0 %639
        %641 = vrot.lane.b32.xlu0 %v562, 48
        %v642 = vpop.permute.xlu0 %641
        %643 = vrot.lane.b32.xlu0 %v564, 48
        %v644 = vpop.permute.xlu0 %643
        %645 = vrot.lane.b32.xlu0 %v566, 48
        %v646 = vpop.permute.xlu0 %645
        %647 = vrot.lane.b32.xlu0 %v568, 48
        %v648 = vpop.permute.xlu0 %647
        %649 = vrot.lane.b32.xlu0 %v570, 48
        %v650 = vpop.permute.xlu0 %649
        %651 = vrot.lane.b32.xlu0 %v572, 48
        %v652 = vpop.permute.xlu0 %651
        %653 = vrot.lane.b32.xlu0 %v574, 48
        %v654 = vpop.permute.xlu0 %653
        %655 = vrot.lane.b32.xlu0 %v576, 48
        %v656 = vpop.permute.xlu0 %655
        %657 = vrot.lane.b32.xlu0 %v578, 48
        %v658 = vpop.permute.xlu0 %657
        %659 = vrot.lane.b32.xlu0 %v624, 48
        %v660 = vpop.permute.xlu0 %659
        %661 = vrot.lane.b32.xlu0 %v626, 48
        %v662 = vpop.permute.xlu0 %661
        %vm663 = vsmask.f32 6400
        %v664 = vrot.slane %v371, 1
        %v665 = vrot.slane %v367, 2
        %v666 = vor.u32 %v664, %v665
        %v667 = vrot.slane %v379, 1
        %v668 = vrot.slane %v375, 2
        %v669 = vor.u32 %v667, %v668
        %v670 = vsel %vm663, %v666, %v669
        %v671 = vrot.slane %v387, 1
        %v672 = vrot.slane %v383, 2
        %v673 = vor.u32 %v671, %v672
        %v674 = vsel %vm663, %v669, %v673
        %v675 = vrot.slane %v395, 1
        %v676 = vrot.slane %v391, 2
        %v677 = vor.u32 %v675, %v676
        %v678 = vsel %vm663, %v673, %v677
        %v679 = vrot.slane %v403, 1
        %v680 = vrot.slane %v399, 2
        %v681 = vor.u32 %v679, %v680
        %v682 = vsel %vm663, %v677, %v681
        %v683 = vrot.slane %v411, 1
        %v684 = vrot.slane %v407, 2
        %v685 = vor.u32 %v683, %v684
        %v686 = vsel %vm663, %v681, %v685
        %v687 = vrot.slane %v419, 1
        %v688 = vrot.slane %v415, 2
        %v689 = vor.u32 %v687, %v688
        %v690 = vsel %vm663, %v685, %v689
        %v691 = vrot.slane %v427, 1
        %v692 = vrot.slane %v423, 2
        %v693 = vor.u32 %v691, %v692
        %v694 = vsel %vm663, %v689, %v693
        %v695 = vrot.slane %v435, 1
        %v696 = vrot.slane %v431, 2
        %v697 = vor.u32 %v695, %v696
        %v698 = vsel %vm663, %v693, %v697
        %v699 = vrot.slane %v443, 1
        %v700 = vrot.slane %v439, 2
        %v701 = vor.u32 %v699, %v700
        %v702 = vsel %vm663, %v697, %v701
        %v703 = vrot.slane %v451, 1
        %v704 = vrot.slane %v447, 2
        %v705 = vor.u32 %v703, %v704
        %v706 = vsel %vm663, %v701, %v705
        %v707 = vrot.slane %v459, 1
        %v708 = vrot.slane %v455, 2
        %v709 = vor.u32 %v707, %v708
        %v710 = vsel %vm663, %v705, %v709
        %v711 = vrot.slane %v467, 1
        %v712 = vrot.slane %v463, 2
        %v713 = vor.u32 %v711, %v712
        %v714 = vsel %vm663, %v709, %v713
        %v715 = vrot.slane %v475, 1
        %v716 = vrot.slane %v471, 2
        %v717 = vor.u32 %v715, %v716
        %v718 = vsel %vm663, %v713, %v717
        %v719 = vrot.slane %v483, 1
        %v720 = vrot.slane %v479, 2
        %v721 = vor.u32 %v719, %v720
        %v722 = vsel %vm663, %v717, %v721
        %v723 = vrot.slane %v491, 1
        %v724 = vrot.slane %v487, 2
        %v725 = vor.u32 %v723, %v724
        %v726 = vsel %vm663, %v721, %v725
        %v727 = vrot.slane %v499, 1
        %v728 = vrot.slane %v495, 2
        %v729 = vor.u32 %v727, %v728
        %v730 = vsel %vm663, %v725, %v729
        %v732 = vshrl.u32 %v621, 16
        %v734 = vrot.slane %v732, 1
        %v735 = vshll.u32 %v621, 16
        %v737 = vrot.slane %v735, 2
        %v738 = vor.u32 %v734, %v737
        %v739 = vsel %vm663, %v729, %v738
        %v741 = vshrl.u32 %v622, 16
        %v743 = vrot.slane %v741, 1
        %v744 = vshll.u32 %v622, 16
        %v746 = vrot.slane %v744, 2
        %v747 = vor.u32 %v743, %v746
        %v748 = vsel %vm663, %v738, %v747
        %749 = vrot.lane.b32.xlu0 %v670, 64
        %v750 = vpop.permute.xlu0 %749
        %751 = vrot.lane.b32.xlu0 %v674, 64
        %v752 = vpop.permute.xlu0 %751
        %753 = vrot.lane.b32.xlu0 %v678, 64
        %v754 = vpop.permute.xlu0 %753
        %755 = vrot.lane.b32.xlu0 %v682, 64
        %v756 = vpop.permute.xlu0 %755
        %757 = vrot.lane.b32.xlu0 %v686, 64
        %v758 = vpop.permute.xlu0 %757
        %759 = vrot.lane.b32.xlu0 %v690, 64
        %v760 = vpop.permute.xlu0 %759
        %761 = vrot.lane.b32.xlu0 %v694, 64
        %v762 = vpop.permute.xlu0 %761
        %763 = vrot.lane.b32.xlu0 %v698, 64
        %v764 = vpop.permute.xlu0 %763
        %765 = vrot.lane.b32.xlu0 %v702, 64
        %v766 = vpop.permute.xlu0 %765
        %767 = vrot.lane.b32.xlu0 %v706, 64
        %v768 = vpop.permute.xlu0 %767
        %769 = vrot.lane.b32.xlu0 %v710, 64
        %v770 = vpop.permute.xlu0 %769
        %771 = vrot.lane.b32.xlu0 %v714, 64
        %v772 = vpop.permute.xlu0 %771
        %773 = vrot.lane.b32.xlu0 %v718, 64
        %v774 = vpop.permute.xlu0 %773
        %775 = vrot.lane.b32.xlu0 %v722, 64
        %v776 = vpop.permute.xlu0 %775
        %777 = vrot.lane.b32.xlu0 %v726, 64
        %v778 = vpop.permute.xlu0 %777
        %779 = vrot.lane.b32.xlu0 %v730, 64
        %v780 = vpop.permute.xlu0 %779
        %781 = vrot.lane.b32.xlu0 %v739, 64
        %v782 = vpop.permute.xlu0 %781
        %783 = vrot.lane.b32.xlu0 %v748, 64
        %v784 = vpop.permute.xlu0 %783
        %vm785 = vcmask 1045504
        %v786 = vrot.slane %v338, 2
        %v787 = vrot.slane %v339, 2
        %v788 = vsel %vm785, %v786, %v787
        %v789 = vrot.slane %v340, 2
        %v790 = vsel %vm785, %v787, %v789
        %v791 = vrot.slane %v341, 2
        %v792 = vsel %vm785, %v789, %v791
        %v793 = vrot.slane %v342, 2
        %v794 = vsel %vm785, %v791, %v793
        %v795 = vrot.slane %v343, 2
        %v796 = vsel %vm785, %v793, %v795
        %v797 = vrot.slane %v344, 2
        %v798 = vsel %vm785, %v795, %v797
        %v799 = vrot.slane %v345, 2
        %v800 = vsel %vm785, %v797, %v799
        %v801 = vrot.slane %v346, 2
        %v802 = vsel %vm785, %v799, %v801
        %v803 = vrot.slane %v347, 2
        %v804 = vsel %vm785, %v801, %v803
        %v805 = vrot.slane %v348, 2
        %v806 = vsel %vm785, %v803, %v805
        %v807 = vrot.slane %v349, 2
        %v808 = vsel %vm785, %v805, %v807
        %v809 = vrot.slane %v350, 2
        %v810 = vsel %vm785, %v807, %v809
        %v811 = vrot.slane %v351, 2
        %v812 = vsel %vm785, %v809, %v811
        %v813 = vrot.slane %v352, 2
        %v814 = vsel %vm785, %v811, %v813
        %v815 = vrot.slane %v353, 2
        %v816 = vsel %vm785, %v813, %v815
        %v817 = vrot.slane %v354, 2
        %v818 = vsel %vm785, %v815, %v817
        %v819 = vrot.slane %v621, 2
        %v820 = vsel %vm785, %v817, %v819
        %v821 = vrot.slane %v622, 2
        %v822 = vsel %vm785, %v819, %v821
        %823 = vrot.lane.b32.xlu0 %v788, 80
        %v824 = vpop.permute.xlu0 %823
        %825 = vrot.lane.b32.xlu0 %v790, 80
        %v826 = vpop.permute.xlu0 %825
        %827 = vrot.lane.b32.xlu0 %v792, 80
        %v828 = vpop.permute.xlu0 %827
        %829 = vrot.lane.b32.xlu0 %v794, 80
        %v830 = vpop.permute.xlu0 %829
        %831 = vrot.lane.b32.xlu0 %v796, 80
        %v832 = vpop.permute.xlu0 %831
        %833 = vrot.lane.b32.xlu0 %v798, 80
        %v834 = vpop.permute.xlu0 %833
        %835 = vrot.lane.b32.xlu0 %v800, 80
        %v836 = vpop.permute.xlu0 %835
        %837 = vrot.lane.b32.xlu0 %v802, 80
        %v838 = vpop.permute.xlu0 %837
        %839 = vrot.lane.b32.xlu0 %v804, 80
        %v840 = vpop.permute.xlu0 %839
        %841 = vrot.lane.b32.xlu0 %v806, 80
        %v842 = vpop.permute.xlu0 %841
        %843 = vrot.lane.b32.xlu0 %v808, 80
        %v844 = vpop.permute.xlu0 %843
        %845 = vrot.lane.b32.xlu0 %v810, 80
        %v846 = vpop.permute.xlu0 %845
        %847 = vrot.lane.b32.xlu0 %v812, 80
        %v848 = vpop.permute.xlu0 %847
        %849 = vrot.lane.b32.xlu0 %v814, 80
        %v850 = vpop.permute.xlu0 %849
        %851 = vrot.lane.b32.xlu0 %v816, 80
        %v852 = vpop.permute.xlu0 %851
        %853 = vrot.lane.b32.xlu0 %v818, 80
        %v854 = vpop.permute.xlu0 %853
        %855 = vrot.lane.b32.xlu0 %v820, 80
        %v856 = vpop.permute.xlu0 %855
        %857 = vrot.lane.b32.xlu0 %v822, 80
        %v858 = vpop.permute.xlu0 %857
        %v861 = vunpack.c.l.b16 %v263
        %v862 = vunpack.c.l.b16 %v264
        %v863 = vpack.c.b16 %v861, %v620
        %v864 = vpack.c.b16 %v862, %v862
        %v865 = vrot.slane %v863, 2
        %v866 = vsel %vm785, %v819, %v865
        %v867 = vrot.slane %v864, 2
        %v868 = vsel %vm785, %v865, %v867
        %869 = vrot.lane.b32.xlu0 %v790, 96
        %v870 = vpop.permute.xlu0 %869
        %871 = vrot.lane.b32.xlu0 %v792, 96
        %v872 = vpop.permute.xlu0 %871
        %873 = vrot.lane.b32.xlu0 %v794, 96
        %v874 = vpop.permute.xlu0 %873
        %875 = vrot.lane.b32.xlu0 %v796, 96
        %v876 = vpop.permute.xlu0 %875
        %877 = vrot.lane.b32.xlu0 %v798, 96
        %v878 = vpop.permute.xlu0 %877
        %879 = vrot.lane.b32.xlu0 %v800, 96
        %v880 = vpop.permute.xlu0 %879
        %881 = vrot.lane.b32.xlu0 %v802, 96
        %v882 = vpop.permute.xlu0 %881
        %883 = vrot.lane.b32.xlu0 %v804, 96
        %v884 = vpop.permute.xlu0 %883
        %885 = vrot.lane.b32.xlu0 %v806, 96
        %v886 = vpop.permute.xlu0 %885
        %887 = vrot.lane.b32.xlu0 %v808, 96
        %v888 = vpop.permute.xlu0 %887
        %889 = vrot.lane.b32.xlu0 %v810, 96
        %v890 = vpop.permute.xlu0 %889
        %891 = vrot.lane.b32.xlu0 %v812, 96
        %v892 = vpop.permute.xlu0 %891
        %893 = vrot.lane.b32.xlu0 %v814, 96
        %v894 = vpop.permute.xlu0 %893
        %895 = vrot.lane.b32.xlu0 %v816, 96
        %v896 = vpop.permute.xlu0 %895
        %897 = vrot.lane.b32.xlu0 %v818, 96
        %v898 = vpop.permute.xlu0 %897
        %899 = vrot.lane.b32.xlu0 %v820, 96
        %v900 = vpop.permute.xlu0 %899
        %901 = vrot.lane.b32.xlu0 %v866, 96
        %v902 = vpop.permute.xlu0 %901
        %903 = vrot.lane.b32.xlu0 %v868, 96
        %v904 = vpop.permute.xlu0 %903
        %vm905 = vsmask.f32 5376
        %v906 = vrot.slane %v379, 2
        %v907 = vrot.slane %v375, 3
        %v908 = vor.u32 %v906, %v907
        %v909 = vrot.slane %v387, 2
        %v910 = vrot.slane %v383, 3
        %v911 = vor.u32 %v909, %v910
        %v912 = vsel %vm905, %v908, %v911
        %v913 = vrot.slane %v395, 2
        %v914 = vrot.slane %v391, 3
        %v915 = vor.u32 %v913, %v914
        %v916 = vsel %vm905, %v911, %v915
        %v917 = vrot.slane %v403, 2
        %v918 = vrot.slane %v399, 3
        %v919 = vor.u32 %v917, %v918
        %v920 = vsel %vm905, %v915, %v919
        %v921 = vrot.slane %v411, 2
        %v922 = vrot.slane %v407, 3
        %v923 = vor.u32 %v921, %v922
        %v924 = vsel %vm905, %v919, %v923
        %v925 = vrot.slane %v419, 2
        %v926 = vrot.slane %v415, 3
        %v927 = vor.u32 %v925, %v926
        %v928 = vsel %vm905, %v923, %v927
        %v929 = vrot.slane %v427, 2
        %v930 = vrot.slane %v423, 3
        %v931 = vor.u32 %v929, %v930
        %v932 = vsel %vm905, %v927, %v931
        %v933 = vrot.slane %v435, 2
        %v934 = vrot.slane %v431, 3
        %v935 = vor.u32 %v933, %v934
        %v936 = vsel %vm905, %v931, %v935
        %v937 = vrot.slane %v443, 2
        %v938 = vrot.slane %v439, 3
        %v939 = vor.u32 %v937, %v938
        %v940 = vsel %vm905, %v935, %v939
        %v941 = vrot.slane %v451, 2
        %v942 = vrot.slane %v447, 3
        %v943 = vor.u32 %v941, %v942
        %v944 = vsel %vm905, %v939, %v943
        %v945 = vrot.slane %v459, 2
        %v946 = vrot.slane %v455, 3
        %v947 = vor.u32 %v945, %v946
        %v948 = vsel %vm905, %v943, %v947
        %v949 = vrot.slane %v467, 2
        %v950 = vrot.slane %v463, 3
        %v951 = vor.u32 %v949, %v950
        %v952 = vsel %vm905, %v947, %v951
        %v953 = vrot.slane %v475, 2
        %v954 = vrot.slane %v471, 3
        %v955 = vor.u32 %v953, %v954
        %v956 = vsel %vm905, %v951, %v955
        %v957 = vrot.slane %v483, 2
        %v958 = vrot.slane %v479, 3
        %v959 = vor.u32 %v957, %v958
        %v960 = vsel %vm905, %v955, %v959
        %v961 = vrot.slane %v491, 2
        %v962 = vrot.slane %v487, 3
        %v963 = vor.u32 %v961, %v962
        %v964 = vsel %vm905, %v959, %v963
        %v965 = vrot.slane %v499, 2
        %v966 = vrot.slane %v495, 3
        %v967 = vor.u32 %v965, %v966
        %v968 = vsel %vm905, %v963, %v967
        %v969 = vrot.slane %v732, 2
        %v970 = vrot.slane %v735, 3
        %v971 = vor.u32 %v969, %v970
        %v972 = vsel %vm905, %v967, %v971
        %v974 = vshrl.u32 %v863, 16
        %v976 = vrot.slane %v974, 2
        %v977 = vshll.u32 %v863, 16
        %v979 = vrot.slane %v977, 3
        %v980 = vor.u32 %v976, %v979
        %v981 = vsel %vm905, %v971, %v980
        %v983 = vshrl.u32 %v864, 16
        %v985 = vrot.slane %v983, 2
        %v986 = vshll.u32 %v864, 16
        %v988 = vrot.slane %v986, 3
        %v989 = vor.u32 %v985, %v988
        %v990 = vsel %vm905, %v980, %v989
        %991 = vrot.lane.b32.xlu0 %v912, 112
        %v992 = vpop.permute.xlu0 %991
        %993 = vrot.lane.b32.xlu0 %v916, 112
        %v994 = vpop.permute.xlu0 %993
        %995 = vrot.lane.b32.xlu0 %v920, 112
        %v996 = vpop.permute.xlu0 %995
        %997 = vrot.lane.b32.xlu0 %v924, 112
        %v998 = vpop.permute.xlu0 %997
        %999 = vrot.lane.b32.xlu0 %v928, 112
        %v1000 = vpop.permute.xlu0 %999
        %1001 = vrot.lane.b32.xlu0 %v932, 112
        %v1002 = vpop.permute.xlu0 %1001
        %1003 = vrot.lane.b32.xlu0 %v936, 112
        %v1004 = vpop.permute.xlu0 %1003
        %1005 = vrot.lane.b32.xlu0 %v940, 112
        %v1006 = vpop.permute.xlu0 %1005
        %1007 = vrot.lane.b32.xlu0 %v944, 112
        %v1008 = vpop.permute.xlu0 %1007
        %1009 = vrot.lane.b32.xlu0 %v948, 112
        %v1010 = vpop.permute.xlu0 %1009
        %1011 = vrot.lane.b32.xlu0 %v952, 112
        %v1012 = vpop.permute.xlu0 %1011
        %1013 = vrot.lane.b32.xlu0 %v956, 112
        %v1014 = vpop.permute.xlu0 %1013
        %1015 = vrot.lane.b32.xlu0 %v960, 112
        %v1016 = vpop.permute.xlu0 %1015
        %1017 = vrot.lane.b32.xlu0 %v964, 112
        %v1018 = vpop.permute.xlu0 %1017
        %1019 = vrot.lane.b32.xlu0 %v968, 112
        %v1020 = vpop.permute.xlu0 %1019
        %1021 = vrot.lane.b32.xlu0 %v972, 112
        %v1022 = vpop.permute.xlu0 %1021
        %1023 = vrot.lane.b32.xlu0 %v981, 112
        %v1024 = vpop.permute.xlu0 %1023
        %1025 = vrot.lane.b32.xlu0 %v990, 112
        %v1026 = vpop.permute.xlu0 %1025
        %vm1027 = vcmask 1044480
        %v1028 = vrot.slane %v339, 3
        %v1029 = vrot.slane %v340, 3
        %v1030 = vsel %vm1027, %v1028, %v1029
        %v1031 = vrot.slane %v341, 3
        %v1032 = vsel %vm1027, %v1029, %v1031
        %v1033 = vrot.slane %v342, 3
        %v1034 = vsel %vm1027, %v1031, %v1033
        %v1035 = vrot.slane %v343, 3
        %v1036 = vsel %vm1027, %v1033, %v1035
        %v1037 = vrot.slane %v344, 3
        %v1038 = vsel %vm1027, %v1035, %v1037
        %v1039 = vrot.slane %v345, 3
        %v1040 = vsel %vm1027, %v1037, %v1039
        %v1041 = vrot.slane %v346, 3
        %v1042 = vsel %vm1027, %v1039, %v1041
        %v1043 = vrot.slane %v347, 3
        %v1044 = vsel %vm1027, %v1041, %v1043
        %v1045 = vrot.slane %v348, 3
        %v1046 = vsel %vm1027, %v1043, %v1045
        %v1047 = vrot.slane %v349, 3
        %v1048 = vsel %vm1027, %v1045, %v1047
        %v1049 = vrot.slane %v350, 3
        %v1050 = vsel %vm1027, %v1047, %v1049
        %v1051 = vrot.slane %v351, 3
        %v1052 = vsel %vm1027, %v1049, %v1051
        %v1053 = vrot.slane %v352, 3
        %v1054 = vsel %vm1027, %v1051, %v1053
        %v1055 = vrot.slane %v353, 3
        %v1056 = vsel %vm1027, %v1053, %v1055
        %v1057 = vrot.slane %v354, 3
        %v1058 = vsel %vm1027, %v1055, %v1057
        %v1059 = vrot.slane %v621, 3
        %v1060 = vsel %vm1027, %v1057, %v1059
        %v1061 = vrot.slane %v863, 3
        %v1062 = vsel %vm1027, %v1059, %v1061
        %v1063 = vrot.slane %v864, 3
        %v1064 = vsel %vm1027, %v1061, %v1063
        %vm1065 = vcmask 130048
        %v1067 = vsel %vm1065, %v337, %v508
        %v1069 = vsel %vm1065, %v338, %v510
        %v1071 = vsel %vm1065, %v339, %v512
        %v1073 = vsel %vm1065, %v340, %v514
        %v1075 = vsel %vm1065, %v341, %v516
        %v1077 = vsel %vm1065, %v342, %v518
        %v1079 = vsel %vm1065, %v343, %v520
        %v1081 = vsel %vm1065, %v344, %v522
        %v1083 = vsel %vm1065, %v345, %v524
        %v1085 = vsel %vm1065, %v346, %v526
        %v1087 = vsel %vm1065, %v347, %v528
        %v1089 = vsel %vm1065, %v348, %v530
        %v1091 = vsel %vm1065, %v349, %v532
        %v1093 = vsel %vm1065, %v350, %v534
        %v1095 = vsel %vm1065, %v351, %v536
        %v1097 = vsel %vm1065, %v352, %v538
        %v1099 = vsel %vm1065, %v353, %v540
        %v1101 = vsel %vm1065, %v354, %v542
        %vm1102 = vcmask 261120
        %v1104 = vsel %vm1102, %v1067, %v582
        %v1106 = vsel %vm1102, %v1069, %v584
        %v1108 = vsel %vm1102, %v1071, %v586
        %v1110 = vsel %vm1102, %v1073, %v588
        %v1112 = vsel %vm1102, %v1075, %v590
        %v1114 = vsel %vm1102, %v1077, %v592
        %v1116 = vsel %vm1102, %v1079, %v594
        %v1118 = vsel %vm1102, %v1081, %v596
        %v1120 = vsel %vm1102, %v1083, %v598
        %v1122 = vsel %vm1102, %v1085, %v600
        %v1124 = vsel %vm1102, %v1087, %v602
        %v1126 = vsel %vm1102, %v1089, %v604
        %v1128 = vsel %vm1102, %v1091, %v606
        %v1130 = vsel %vm1102, %v1093, %v608
        %v1132 = vsel %vm1102, %v1095, %v610
        %v1134 = vsel %vm1102, %v1097, %v612
        %v1136 = vsel %vm1102, %v1099, %v614
        %v1138 = vsel %vm1102, %v1101, %v616
        %vm1139 = vcmask 392192
        %v1141 = vsel %vm1139, %v1104, %v628
        %v1143 = vsel %vm1139, %v1106, %v630
        %v1145 = vsel %vm1139, %v1108, %v632
        %v1147 = vsel %vm1139, %v1110, %v634
        %v1149 = vsel %vm1139, %v1112, %v636
        %v1151 = vsel %vm1139, %v1114, %v638
        %v1153 = vsel %vm1139, %v1116, %v640
        %v1155 = vsel %vm1139, %v1118, %v642
        %v1157 = vsel %vm1139, %v1120, %v644
        %v1159 = vsel %vm1139, %v1122, %v646
        %v1161 = vsel %vm1139, %v1124, %v648
        %v1163 = vsel %vm1139, %v1126, %v650
        %v1165 = vsel %vm1139, %v1128, %v652
        %v1167 = vsel %vm1139, %v1130, %v654
        %v1169 = vsel %vm1139, %v1132, %v656
        %v1171 = vsel %vm1139, %v1134, %v658
        %v1173 = vsel %vm1139, %v1136, %v660
        %v1175 = vsel %vm1139, %v1138, %v662
        %vm1176 = vcmask 523264
        %v1178 = vsel %vm1176, %v1141, %v750
        %v1180 = vsel %vm1176, %v1143, %v752
        %v1182 = vsel %vm1176, %v1145, %v754
        %v1184 = vsel %vm1176, %v1147, %v756
        %v1186 = vsel %vm1176, %v1149, %v758
        %v1188 = vsel %vm1176, %v1151, %v760
        %v1190 = vsel %vm1176, %v1153, %v762
        %v1192 = vsel %vm1176, %v1155, %v764
        %v1194 = vsel %vm1176, %v1157, %v766
        %v1196 = vsel %vm1176, %v1159, %v768
        %v1198 = vsel %vm1176, %v1161, %v770
        %v1200 = vsel %vm1176, %v1163, %v772
        %v1202 = vsel %vm1176, %v1165, %v774
        %v1204 = vsel %vm1176, %v1167, %v776
        %v1206 = vsel %vm1176, %v1169, %v778
        %v1208 = vsel %vm1176, %v1171, %v780
        %v1210 = vsel %vm1176, %v1173, %v782
        %v1212 = vsel %vm1176, %v1175, %v784
        %vm1213 = vcmask 654336
        %v1215 = vsel %vm1213, %v1178, %v824
        %v1217 = vsel %vm1213, %v1180, %v826
        %v1219 = vsel %vm1213, %v1182, %v828
        %v1221 = vsel %vm1213, %v1184, %v830
        %v1223 = vsel %vm1213, %v1186, %v832
        %v1225 = vsel %vm1213, %v1188, %v834
        %v1227 = vsel %vm1213, %v1190, %v836
        %v1229 = vsel %vm1213, %v1192, %v838
        %v1231 = vsel %vm1213, %v1194, %v840
        %v1233 = vsel %vm1213, %v1196, %v842
        %v1235 = vsel %vm1213, %v1198, %v844
        %v1237 = vsel %vm1213, %v1200, %v846
        %v1239 = vsel %vm1213, %v1202, %v848
        %v1241 = vsel %vm1213, %v1204, %v850
        %v1243 = vsel %vm1213, %v1206, %v852
        %v1245 = vsel %vm1213, %v1208, %v854
        %v1247 = vsel %vm1213, %v1210, %v856
        %v1249 = vsel %vm1213, %v1212, %v858
        %vm1250 = vcmask 785408
        %v1252 = vsel %vm1250, %v1215, %v870
        %v1254 = vsel %vm1250, %v1217, %v872
        %v1256 = vsel %vm1250, %v1219, %v874
        %v1258 = vsel %vm1250, %v1221, %v876
        %v1260 = vsel %vm1250, %v1223, %v878
        %v1262 = vsel %vm1250, %v1225, %v880
        %v1264 = vsel %vm1250, %v1227, %v882
        %v1266 = vsel %vm1250, %v1229, %v884
        %v1268 = vsel %vm1250, %v1231, %v886
        %v1270 = vsel %vm1250, %v1233, %v888
        %v1272 = vsel %vm1250, %v1235, %v890
        %v1274 = vsel %vm1250, %v1237, %v892
        %v1276 = vsel %vm1250, %v1239, %v894
        %v1278 = vsel %vm1250, %v1241, %v896
        %v1280 = vsel %vm1250, %v1243, %v898
        %v1282 = vsel %vm1250, %v1245, %v900
        %v1284 = vsel %vm1250, %v1247, %v902
        %v1286 = vsel %vm1250, %v1249, %v904
        %vm1287 = vcmask 916480
        %v1289 = vsel %vm1287, %v1252, %v992
        %v1292 = vsel %vm1287, %v1254, %v994
        %v1295 = vsel %vm1287, %v1256, %v996
        %v1298 = vsel %vm1287, %v1258, %v998
        %v1301 = vsel %vm1287, %v1260, %v1000
        %v1304 = vsel %vm1287, %v1262, %v1002
        %v1307 = vsel %vm1287, %v1264, %v1004
        %v1310 = vsel %vm1287, %v1266, %v1006
        %v1313 = vsel %vm1287, %v1268, %v1008
        %v1316 = vsel %vm1287, %v1270, %v1010
        %v1319 = vsel %vm1287, %v1272, %v1012
        %v1322 = vsel %vm1287, %v1274, %v1014
        %v1325 = vsel %vm1287, %v1276, %v1016
        %v1328 = vsel %vm1287, %v1278, %v1018
        %v1331 = vsel %vm1287, %v1280, %v1020
        %v1334 = vsel %vm1287, %v1282, %v1022
        %v1337 = vsel %vm1287, %v1284, %v1024
        %v1340 = vsel %vm1287, %v1286, %v1026
        %v1342 = vld [vmem:[%s1] sm:$0xf]
        %v1343 = vld [vmem:[%s1 + $0x4] sm:$0xf]
        %v1344 = vld [vmem:[%s1 + $0x8] sm:$0xf]
        %v1345 = vld [vmem:[%s1 + $0xc] sm:$0xf]
        %v1346 = vld [vmem:[%s1 + $0x10] sm:$0xf]
        %v1347 = vld [vmem:[%s1 + $0x14] sm:$0xf]
        %v1348 = vld [vmem:[%s1 + $0x18] sm:$0xf]
        %v1349 = vld [vmem:[%s1 + $0x1c] sm:$0xf]
        %v1350 = vld [vmem:[%s1 + $0x20] sm:$0xf]
        %v1351 = vld [vmem:[%s1 + $0x24] sm:$0xf]
        %v1352 = vld [vmem:[%s1 + $0x28] sm:$0xf]
        %v1353 = vld [vmem:[%s1 + $0x2c] sm:$0xf]
        %v1354 = vld [vmem:[%s1 + $0x30] sm:$0xf]
        %v1355 = vld [vmem:[%s1 + $0x34] sm:$0xf]
        %v1356 = vld [vmem:[%s1 + $0x38] sm:$0xf]
        %v1357 = vld [vmem:[%s1 + $0x3c] sm:$0xf]
        %v1358 = vld [vmem:[%s1 + $0x40] sm:$0xf]
        %v1359 = vld [vmem:[%s1 + $0x44] sm:$0xf]
        %v1360 = vld [vmem:[%s2] sm:$0x1]
        %v1362 = vlaneseq
        %v1363 = vshrl.u32 %v1362, 7
        %v1364 = vsub.s32 0, %v1363
        %v1365 = vrot.slane %v1360, %v1364
        %v1385 = vunpack.c.l.b16 %v1342
        %v1386 = vunpack.c.l.b16 %v1343
        %v1387 = vunpack.c.l.b16 %v1344
        %v1388 = vunpack.c.l.b16 %v1345
        %v1389 = vunpack.c.l.b16 %v1346
        %v1390 = vunpack.c.l.b16 %v1347
        %v1391 = vunpack.c.l.b16 %v1348
        %v1392 = vunpack.c.l.b16 %v1349
        %v1393 = vunpack.c.l.b16 %v1350
        %v1394 = vunpack.c.l.b16 %v1351
        %v1395 = vunpack.c.l.b16 %v1352
        %v1396 = vunpack.c.l.b16 %v1353
        %v1397 = vunpack.c.l.b16 %v1354
        %v1398 = vunpack.c.l.b16 %v1355
        %v1399 = vunpack.c.l.b16 %v1356
        %v1400 = vunpack.c.l.b16 %v1357
        %v1401 = vunpack.c.l.b16 %v1358
        %v1402 = vunpack.c.l.b16 %v1359
        %v1403 = vpack.c.b16 %v1386, %v1385
        %v1404 = vpack.c.b16 %v1388, %v1387
        %v1405 = vpack.c.b16 %v1390, %v1389
        %v1406 = vpack.c.b16 %v1392, %v1391
        %v1407 = vpack.c.b16 %v1394, %v1393
        %v1408 = vpack.c.b16 %v1396, %v1395
        %v1409 = vpack.c.b16 %v1398, %v1397
        %v1410 = vpack.c.b16 %v1400, %v1399
        %v1411 = vpack.c.b16 %v1402, %v1401
        %v1422 = vsel %vm1065, %v1030, 0
        %v1425 = vsel %vm1065, %v1032, 0
        %v1428 = vsel %vm1065, %v1034, 0
        %v1431 = vsel %vm1065, %v1036, 0
        %v1434 = vsel %vm1065, %v1038, 0
        %v1437 = vsel %vm1065, %v1040, 0
        %v1440 = vsel %vm1065, %v1042, 0
        %v1443 = vsel %vm1065, %v1044, 0
        %v1446 = vsel %vm1065, %v1046, 0
        %v1449 = vsel %vm1065, %v1048, 0
        %v1452 = vsel %vm1065, %v1050, 0
        %v1455 = vsel %vm1065, %v1052, 0
        %v1458 = vsel %vm1065, %v1054, 0
        %v1461 = vsel %vm1065, %v1056, 0
        %v1464 = vsel %vm1065, %v1058, 0
        %v1467 = vsel %vm1065, %v1060, 0
        %v1470 = vsel %vm1065, %v1062, 0
        %v1473 = vsel %vm1065, %v1064, 0
        %1475 = vmatprep.subr.bf16.mxu0 0
        %1476 = vmatpush1.bf16.msra.mxu0 %v1403
        %1477 = vmatprep.subr.bf16.mxu0 0
        %1478 = vmatpush1.bf16.msra.mxu0 %v1404
        %1479 = vmatprep.subr.bf16.mxu0 0
        %1480 = vmatpush1.bf16.msra.mxu0 %v1405
        %1481 = vmatprep.subr.bf16.mxu0 0
        %1482 = vmatpush1.bf16.msra.mxu0 %v1406
        %1483 = vmatprep.subr.bf16.mxu0 0
        %1484 = vmatpush1.bf16.msra.mxu0 %v1407
        %1485 = vmatprep.subr.bf16.mxu0 0
        %1486 = vmatpush1.bf16.msra.mxu0 %v1408
        %1487 = vmatprep.subr.bf16.mxu0 0
        %1488 = vmatpush1.bf16.msra.mxu0 %v1409
        %1489 = vmatprep.subr.bf16.mxu0 0
        %1490 = vmatpush1.bf16.msra.mxu0 %v1410
        %1491 = vmatprep.subr.bf16.mxu0 0
        %1492 = vmatpush1.bf16.msra.mxu0 %v1411
        %1493 = vmatprep.subr.bf16.mxu0 0
        %1494 = vmatpush1.bf16.msra.mxu0 0
        %1495 = vmatprep.subr.bf16.mxu0 0
        %1496 = vmatpush1.bf16.msra.mxu0 0
        %1497 = vmatprep.subr.bf16.mxu0 0
        %1498 = vmatpush1.bf16.msra.mxu0 0
        %1499 = vmatprep.subr.bf16.mxu0 0
        %1500 = vmatpush1.bf16.msra.mxu0 0
        %1501 = vmatprep.subr.bf16.mxu0 0
        %1502 = vmatpush1.bf16.msra.mxu0 0
        %1503 = vmatprep.subr.bf16.mxu0 0
        %1504 = vmatpush1.bf16.msra.mxu0 0
        %1505 = vmatprep.subr.bf16.mxu0 0
        %1506 = vmatpush1.bf16.msra.mxu0 0
        %1507 = vmatprep.mubr.bf16.mxu0 %v1422
        %1508 = vmatmul.mubr.bf16.gmra.mrb[0].mxu0 %v1289
        %v1509 = vpop.f32.mrb[0].mxu0
        %v1510 = vadd.f32 %v1365, %v1509
        %v1511 = vpop.f32.mrb[0].mxu0
        %v1512 = vpop.f32.mrb[0].mxu0
        %v1513 = vadd.f32 %v1365, %v1512
        %v1514 = vpop.f32.mrb[0].mxu0
        %1515 = vmatprep.mubr.bf16.mxu0 %v1425
        %1516 = vmatmul.mubr.bf16.gmra.mrb[0].mxu0 %v1292
        %v1517 = vpop.f32.mrb[0].mxu0
        %v1518 = vadd.f32 %v1365, %v1517
        %v1519 = vpop.f32.mrb[0].mxu0
        %v1520 = vpop.f32.mrb[0].mxu0
        %v1521 = vadd.f32 %v1365, %v1520
        %v1522 = vpop.f32.mrb[0].mxu0
        %1523 = vmatprep.mubr.bf16.mxu0 %v1428
        %1524 = vmatmul.mubr.bf16.gmra.mrb[0].mxu0 %v1295
        %v1525 = vpop.f32.mrb[0].mxu0
        %v1526 = vadd.f32 %v1365, %v1525
        %v1527 = vpop.f32.mrb[0].mxu0
        %v1528 = vpop.f32.mrb[0].mxu0
        %v1529 = vadd.f32 %v1365, %v1528
        %v1530 = vpop.f32.mrb[0].mxu0
        %1531 = vmatprep.mubr.bf16.mxu0 %v1431
        %1532 = vmatmul.mubr.bf16.gmra.mrb[0].mxu0 %v1298
        %v1533 = vpop.f32.mrb[0].mxu0
        %v1534 = vadd.f32 %v1365, %v1533
        %v1535 = vpop.f32.mrb[0].mxu0
        %v1536 = vpop.f32.mrb[0].mxu0
        %v1537 = vadd.f32 %v1365, %v1536
        %v1538 = vpop.f32.mrb[0].mxu0
        %1539 = vmatprep.mubr.bf16.mxu0 %v1434
        %1540 = vmatmul.mubr.bf16.gmra.mrb[0].mxu0 %v1301
        %v1541 = vpop.f32.mrb[0].mxu0
        %v1542 = vadd.f32 %v1365, %v1541
        %v1543 = vpop.f32.mrb[0].mxu0
        %v1544 = vpop.f32.mrb[0].mxu0
        %v1545 = vadd.f32 %v1365, %v1544
        %v1546 = vpop.f32.mrb[0].mxu0
        %1547 = vmatprep.mubr.bf16.mxu0 %v1437
        %1548 = vmatmul.mubr.bf16.gmra.mrb[0].mxu0 %v1304
        %v1549 = vpop.f32.mrb[0].mxu0
        %v1550 = vadd.f32 %v1365, %v1549
        %v1551 = vpop.f32.mrb[0].mxu0
        %v1552 = vpop.f32.mrb[0].mxu0
        %v1553 = vadd.f32 %v1365, %v1552
        %v1554 = vpop.f32.mrb[0].mxu0
        %1555 = vmatprep.mubr.bf16.mxu0 %v1440
        %1556 = vmatmul.mubr.bf16.gmra.mrb[0].mxu0 %v1307
        %v1557 = vpop.f32.mrb[0].mxu0
        %v1558 = vadd.f32 %v1365, %v1557
        %v1559 = vpop.f32.mrb[0].mxu0
        %v1560 = vpop.f32.mrb[0].mxu0
        %v1561 = vadd.f32 %v1365, %v1560
        %v1562 = vpop.f32.mrb[0].mxu0
        %1563 = vmatprep.mubr.bf16.mxu0 %v1443
        %1564 = vmatmul.mubr.bf16.gmra.mrb[0].mxu0 %v1310
        %v1565 = vpop.f32.mrb[0].mxu0
        %v1566 = vadd.f32 %v1365, %v1565
        %v1567 = vpop.f32.mrb[0].mxu0
        %v1568 = vpop.f32.mrb[0].mxu0
        %v1569 = vadd.f32 %v1365, %v1568
        %v1570 = vpop.f32.mrb[0].mxu0
        %1571 = vmatprep.mubr.bf16.mxu0 %v1446
        %1572 = vmatmul.mubr.bf16.gmra.mrb[0].mxu0 %v1313
        %v1573 = vpop.f32.mrb[0].mxu0
        %v1574 = vadd.f32 %v1365, %v1573
        %v1575 = vpop.f32.mrb[0].mxu0
        %v1576 = vpop.f32.mrb[0].mxu0
        %v1577 = vadd.f32 %v1365, %v1576
        %v1578 = vpop.f32.mrb[0].mxu0
        %1579 = vmatprep.mubr.bf16.mxu0 %v1449
        %1580 = vmatmul.mubr.bf16.gmra.mrb[0].mxu0 %v1316
        %v1581 = vpop.f32.mrb[0].mxu0
        %v1582 = vadd.f32 %v1365, %v1581
        %v1583 = vpop.f32.mrb[0].mxu0
        %v1584 = vpop.f32.mrb[0].mxu0
        %v1585 = vadd.f32 %v1365, %v1584
        %v1586 = vpop.f32.mrb[0].mxu0
        %1587 = vmatprep.mubr.bf16.mxu0 %v1452
        %1588 = vmatmul.mubr.bf16.gmra.mrb[0].mxu0 %v1319
        %v1589 = vpop.f32.mrb[0].mxu0
        %v1590 = vadd.f32 %v1365, %v1589
        %v1591 = vpop.f32.mrb[0].mxu0
        %v1592 = vpop.f32.mrb[0].mxu0
        %v1593 = vadd.f32 %v1365, %v1592
        %v1594 = vpop.f32.mrb[0].mxu0
        %1595 = vmatprep.mubr.bf16.mxu0 %v1455
        %1596 = vmatmul.mubr.bf16.gmra.mrb[0].mxu0 %v1322
        %v1597 = vpop.f32.mrb[0].mxu0
        %v1598 = vadd.f32 %v1365, %v1597
        %v1599 = vpop.f32.mrb[0].mxu0
        %v1600 = vpop.f32.mrb[0].mxu0
        %v1601 = vadd.f32 %v1365, %v1600
        %v1602 = vpop.f32.mrb[0].mxu0
        %1603 = vmatprep.mubr.bf16.mxu0 %v1458
        %1604 = vmatmul.mubr.bf16.gmra.mrb[0].mxu0 %v1325
        %v1605 = vpop.f32.mrb[0].mxu0
        %v1606 = vadd.f32 %v1365, %v1605
        %v1607 = vpop.f32.mrb[0].mxu0
        %v1608 = vpop.f32.mrb[0].mxu0
        %v1609 = vadd.f32 %v1365, %v1608
        %v1610 = vpop.f32.mrb[0].mxu0
        %1611 = vmatprep.mubr.bf16.mxu0 %v1461
        %1612 = vmatmul.mubr.bf16.gmra.mrb[0].mxu0 %v1328
        %v1613 = vpop.f32.mrb[0].mxu0
        %v1614 = vadd.f32 %v1365, %v1613
        %v1615 = vpop.f32.mrb[0].mxu0
        %v1616 = vpop.f32.mrb[0].mxu0
        %v1617 = vadd.f32 %v1365, %v1616
        %v1618 = vpop.f32.mrb[0].mxu0
        %1619 = vmatprep.mubr.bf16.mxu0 %v1464
        %1620 = vmatmul.mubr.bf16.gmra.mrb[0].mxu0 %v1331
        %v1621 = vpop.f32.mrb[0].mxu0
        %v1622 = vadd.f32 %v1365, %v1621
        %v1623 = vpop.f32.mrb[0].mxu0
        %v1624 = vpop.f32.mrb[0].mxu0
        %v1625 = vadd.f32 %v1365, %v1624
        %v1626 = vpop.f32.mrb[0].mxu0
        %1627 = vmatprep.mubr.bf16.mxu0 %v1467
        %1628 = vmatmul.mubr.bf16.gmra.mrb[0].mxu0 %v1334
        %v1629 = vpop.f32.mrb[0].mxu0
        %v1630 = vadd.f32 %v1365, %v1629
        %v1631 = vpop.f32.mrb[0].mxu0
        %v1632 = vpop.f32.mrb[0].mxu0
        %v1633 = vadd.f32 %v1365, %v1632
        %v1634 = vpop.f32.mrb[0].mxu0
        %1635 = vmatprep.mubr.bf16.mxu0 %v1470
        %1636 = vmatmul.mubr.bf16.gmra.mrb[0].mxu0 %v1337
        %v1637 = vpop.f32.mrb[0].mxu0
        %v1638 = vadd.f32 %v1365, %v1637
        %v1639 = vpop.f32.mrb[0].mxu0
        %v1640 = vpop.f32.mrb[0].mxu0
        %v1641 = vadd.f32 %v1365, %v1640
        %v1642 = vpop.f32.mrb[0].mxu0
        %1643 = vmatprep.mubr.bf16.mxu0 %v1473
        %1644 = vmatmul.mubr.bf16.gmra.mrb[0].mxu0 %v1340
        %v1645 = vpop.f32.mrb[0].mxu0
        %v1646 = vadd.f32 %v1365, %v1645
        %v1647 = vpop.f32.mrb[0].mxu0
        %v1648 = vpop.f32.mrb[0].mxu0
        %v1649 = vadd.f32 %v1365, %v1648
        %v1650 = vpop.f32.mrb[0].mxu0
        %1651 = vdwg.mxu0
        %v1652 = vmax.f32 %v1510, 0.0
        %v1653 = vmax.f32 %v1513, 0.0
        %v1654 = vmax.f32 %v1518, 0.0
        %v1655 = vmax.f32 %v1521, 0.0
        %v1656 = vmax.f32 %v1526, 0.0
        %v1657 = vmax.f32 %v1529, 0.0
        %v1658 = vmax.f32 %v1534, 0.0
        %v1659 = vmax.f32 %v1537, 0.0
        %v1660 = vmax.f32 %v1542, 0.0
        %v1661 = vmax.f32 %v1545, 0.0
        %v1662 = vmax.f32 %v1550, 0.0
        %v1663 = vmax.f32 %v1553, 0.0
        %v1664 = vmax.f32 %v1558, 0.0
        %v1665 = vmax.f32 %v1561, 0.0
        %v1666 = vmax.f32 %v1566, 0.0
        %v1667 = vmax.f32 %v1569, 0.0
        %v1668 = vmax.f32 %v1574, 0.0
        %v1669 = vmax.f32 %v1577, 0.0
        %v1670 = vmax.f32 %v1582, 0.0
        %v1671 = vmax.f32 %v1585, 0.0
        %v1672 = vmax.f32 %v1590, 0.0
        %v1673 = vmax.f32 %v1593, 0.0
        %v1674 = vmax.f32 %v1598, 0.0
        %v1675 = vmax.f32 %v1601, 0.0
        %v1676 = vmax.f32 %v1606, 0.0
        %v1677 = vmax.f32 %v1609, 0.0
        %v1678 = vmax.f32 %v1614, 0.0
        %v1679 = vmax.f32 %v1617, 0.0
        %v1680 = vmax.f32 %v1622, 0.0
        %v1681 = vmax.f32 %v1625, 0.0
        %v1682 = vmax.f32 %v1630, 0.0
        %v1683 = vmax.f32 %v1633, 0.0
        %v1684 = vmax.f32 %v1638, 0.0
        %v1685 = vmax.f32 %v1641, 0.0
        %v1686 = vmax.f32 %v1646, 0.0
        %v1687 = vmax.f32 %v1649, 0.0
        %v1688 = vpack.c.bf16 %v1653, %v1652
        %v1689 = vpack.c.bf16 %v1655, %v1654
        %v1690 = vpack.c.bf16 %v1657, %v1656
        %v1691 = vpack.c.bf16 %v1659, %v1658
        %v1692 = vpack.c.bf16 %v1661, %v1660
        %v1693 = vpack.c.bf16 %v1663, %v1662
        %v1694 = vpack.c.bf16 %v1665, %v1664
        %v1695 = vpack.c.bf16 %v1667, %v1666
        %v1696 = vpack.c.bf16 %v1669, %v1668
        %v1697 = vpack.c.bf16 %v1671, %v1670
        %v1698 = vpack.c.bf16 %v1673, %v1672
        %v1699 = vpack.c.bf16 %v1675, %v1674
        %v1700 = vpack.c.bf16 %v1677, %v1676
        %v1701 = vpack.c.bf16 %v1679, %v1678
        %v1702 = vpack.c.bf16 %v1681, %v1680
        %v1703 = vpack.c.bf16 %v1683, %v1682
        %v1704 = vpack.c.bf16 %v1685, %v1684
        %v1705 = vpack.c.bf16 %v1687, %v1686
        %v1706 = vld [vmem:[%s3] sm:$0xf]
        %v1707 = vld [vmem:[%s3 + $0x4] sm:$0xf]
        %v1708 = vld [vmem:[%s3 + $0x8] sm:$0xf]
        %v1709 = vld [vmem:[%s3 + $0xc] sm:$0xf]
        %v1710 = vld [vmem:[%s4] sm:$0x1]
        %v1712 = vlaneseq
        %v1713 = vshrl.u32 %v1712, 7
        %v1714 = vsub.s32 0, %v1713
        %v1715 = vrot.slane %v1710, %v1714
        %v1721 = vunpack.c.l.b16 %v1706
        %v1722 = vunpack.c.l.b16 %v1707
        %v1723 = vunpack.c.l.b16 %v1708
        %v1724 = vunpack.c.l.b16 %v1709
        %v1725 = vpack.c.b16 %v1722, %v1721
        %v1726 = vpack.c.b16 %v1724, %v1723
        %v1730 = vsel %vm1102, %v1688, 0
        %v1733 = vsel %vm1102, %v1689, 0
        %v1736 = vsel %vm1102, %v1690, 0
        %v1739 = vsel %vm1102, %v1691, 0
        %v1742 = vsel %vm1102, %v1692, 0
        %v1745 = vsel %vm1102, %v1693, 0
        %v1748 = vsel %vm1102, %v1694, 0
        %v1751 = vsel %vm1102, %v1695, 0
        %v1754 = vsel %vm1102, %v1696, 0
        %v1757 = vsel %vm1102, %v1697, 0
        %v1760 = vsel %vm1102, %v1698, 0
        %v1763 = vsel %vm1102, %v1699, 0
        %v1766 = vsel %vm1102, %v1700, 0
        %v1769 = vsel %vm1102, %v1701, 0
        %v1772 = vsel %vm1102, %v1702, 0
        %v1775 = vsel %vm1102, %v1703, 0
        %v1778 = vsel %vm1102, %v1704, 0
        %v1781 = vsel %vm1102, %v1705, 0
        %1783 = vmatprep.subr.bf16.mxu0 0
        %1784 = vmatpush1.bf16.msra.mxu0 %v1725
        %1785 = vmatprep.subr.bf16.mxu0 0
        %1786 = vmatpush1.bf16.msra.mxu0 %v1726
        %1787 = vmatprep.subr.bf16.mxu0 0
        %1788 = vmatpush1.bf16.msra.mxu0 0
        %1789 = vmatprep.subr.bf16.mxu0 0
        %1790 = vmatpush1.bf16.msra.mxu0 0
        %1791 = vmatprep.subr.bf16.mxu0 0
        %1792 = vmatpush1.bf16.msra.mxu0 0
        %1793 = vmatprep.subr.bf16.mxu0 0
        %1794 = vmatpush1.bf16.msra.mxu0 0
        %1795 = vmatprep.subr.bf16.mxu0 0
        %1796 = vmatpush1.bf16.msra.mxu0 0
        %1797 = vmatprep.subr.bf16.mxu0 0
        %1798 = vmatpush1.bf16.msra.mxu0 0
        %1799 = vmatprep.subr.bf16.mxu0 0
        %1800 = vmatpush1.bf16.msra.mxu0 0
        %1801 = vmatprep.subr.bf16.mxu0 0
        %1802 = vmatpush1.bf16.msra.mxu0 0
        %1803 = vmatprep.subr.bf16.mxu0 0
        %1804 = vmatpush1.bf16.msra.mxu0 0
        %1805 = vmatprep.subr.bf16.mxu0 0
        %1806 = vmatpush1.bf16.msra.mxu0 0
        %1807 = vmatprep.subr.bf16.mxu0 0
        %1808 = vmatpush1.bf16.msra.mxu0 0
        %1809 = vmatprep.subr.bf16.mxu0 0
        %1810 = vmatpush1.bf16.msra.mxu0 0
        %1811 = vmatprep.subr.bf16.mxu0 0
        %1812 = vmatpush1.bf16.msra.mxu0 0
        %1813 = vmatprep.subr.bf16.mxu0 0
        %1814 = vmatpush1.bf16.msra.mxu0 0
        %1815 = vmatprep.mubr.bf16.mxu0 0
        %1816 = vmatmul.mubr.bf16.gmra.mrb[0].mxu0 %v1730
        %v1817 = vpop.f32.mrb[0].mxu0
        %v1818 = vadd.f32 %v1715, %v1817
        %v1819 = vpop.f32.mrb[0].mxu0
        %v1820 = vpop.f32.mrb[0].mxu0
        %v1821 = vadd.f32 %v1715, %v1820
        %v1822 = vpop.f32.mrb[0].mxu0
        %1823 = vmatprep.mubr.bf16.mxu0 0
        %1824 = vmatmul.mubr.bf16.gmra.mrb[0].mxu0 %v1733
        %v1825 = vpop.f32.mrb[0].mxu0
        %v1826 = vadd.f32 %v1715, %v1825
        %v1827 = vpop.f32.mrb[0].mxu0
        %v1828 = vpop.f32.mrb[0].mxu0
        %v1829 = vadd.f32 %v1715, %v1828
        %v1830 = vpop.f32.mrb[0].mxu0
        %1831 = vmatprep.mubr.bf16.mxu0 0
        %1832 = vmatmul.mubr.bf16.gmra.mrb[0].mxu0 %v1736
        %v1833 = vpop.f32.mrb[0].mxu0
        %v1834 = vadd.f32 %v1715, %v1833
        %v1835 = vpop.f32.mrb[0].mxu0
        %v1836 = vpop.f32.mrb[0].mxu0
        %v1837 = vadd.f32 %v1715, %v1836
        %v1838 = vpop.f32.mrb[0].mxu0
        %1839 = vmatprep.mubr.bf16.mxu0 0
        %1840 = vmatmul.mubr.bf16.gmra.mrb[0].mxu0 %v1739
        %v1841 = vpop.f32.mrb[0].mxu0
        %v1842 = vadd.f32 %v1715, %v1841
        %v1843 = vpop.f32.mrb[0].mxu0
        %v1844 = vpop.f32.mrb[0].mxu0
        %v1845 = vadd.f32 %v1715, %v1844
        %v1846 = vpop.f32.mrb[0].mxu0
        %1847 = vmatprep.mubr.bf16.mxu0 0
        %1848 = vmatmul.mubr.bf16.gmra.mrb[0].mxu0 %v1742
        %v1849 = vpop.f32.mrb[0].mxu0
        %v1850 = vadd.f32 %v1715, %v1849
        %v1851 = vpop.f32.mrb[0].mxu0
        %v1852 = vpop.f32.mrb[0].mxu0
        %v1853 = vadd.f32 %v1715, %v1852
        %v1854 = vpop.f32.mrb[0].mxu0
        %1855 = vmatprep.mubr.bf16.mxu0 0
        %1856 = vmatmul.mubr.bf16.gmra.mrb[0].mxu0 %v1745
        %v1857 = vpop.f32.mrb[0].mxu0
        %v1858 = vadd.f32 %v1715, %v1857
        %v1859 = vpop.f32.mrb[0].mxu0
        %v1860 = vpop.f32.mrb[0].mxu0
        %v1861 = vadd.f32 %v1715, %v1860
        %v1862 = vpop.f32.mrb[0].mxu0
        %1863 = vmatprep.mubr.bf16.mxu0 0
        %1864 = vmatmul.mubr.bf16.gmra.mrb[0].mxu0 %v1748
        %v1865 = vpop.f32.mrb[0].mxu0
        %v1866 = vadd.f32 %v1715, %v1865
        %v1867 = vpop.f32.mrb[0].mxu0
        %v1868 = vpop.f32.mrb[0].mxu0
        %v1869 = vadd.f32 %v1715, %v1868
        %v1870 = vpop.f32.mrb[0].mxu0
        %1871 = vmatprep.mubr.bf16.mxu0 0
        %1872 = vmatmul.mubr.bf16.gmra.mrb[0].mxu0 %v1751
        %v1873 = vpop.f32.mrb[0].mxu0
        %v1874 = vadd.f32 %v1715, %v1873
        %v1875 = vpop.f32.mrb[0].mxu0
        %v1876 = vpop.f32.mrb[0].mxu0
        %v1877 = vadd.f32 %v1715, %v1876
        %v1878 = vpop.f32.mrb[0].mxu0
        %1879 = vmatprep.mubr.bf16.mxu0 0
        %1880 = vmatmul.mubr.bf16.gmra.mrb[0].mxu0 %v1754
        %v1881 = vpop.f32.mrb[0].mxu0
        %v1882 = vadd.f32 %v1715, %v1881
        %v1883 = vpop.f32.mrb[0].mxu0
        %v1884 = vpop.f32.mrb[0].mxu0
        %v1885 = vadd.f32 %v1715, %v1884
        %v1886 = vpop.f32.mrb[0].mxu0
        %1887 = vmatprep.mubr.bf16.mxu0 0
        %1888 = vmatmul.mubr.bf16.gmra.mrb[0].mxu0 %v1757
        %v1889 = vpop.f32.mrb[0].mxu0
        %v1890 = vadd.f32 %v1715, %v1889
        %v1891 = vpop.f32.mrb[0].mxu0
        %v1892 = vpop.f32.mrb[0].mxu0
        %v1893 = vadd.f32 %v1715, %v1892
        %v1894 = vpop.f32.mrb[0].mxu0
        %1895 = vmatprep.mubr.bf16.mxu0 0
        %1896 = vmatmul.mubr.bf16.gmra.mrb[0].mxu0 %v1760
        %v1897 = vpop.f32.mrb[0].mxu0
        %v1898 = vadd.f32 %v1715, %v1897
        %v1899 = vpop.f32.mrb[0].mxu0
        %v1900 = vpop.f32.mrb[0].mxu0
        %v1901 = vadd.f32 %v1715, %v1900
        %v1902 = vpop.f32.mrb[0].mxu0
        %1903 = vmatprep.mubr.bf16.mxu0 0
        %1904 = vmatmul.mubr.bf16.gmra.mrb[0].mxu0 %v1763
        %v1905 = vpop.f32.mrb[0].mxu0
        %v1906 = vadd.f32 %v1715, %v1905
        %v1907 = vpop.f32.mrb[0].mxu0
        %v1908 = vpop.f32.mrb[0].mxu0
        %v1909 = vadd.f32 %v1715, %v1908
        %v1910 = vpop.f32.mrb[0].mxu0
        %1911 = vmatprep.mubr.bf16.mxu0 0
        %1912 = vmatmul.mubr.bf16.gmra.mrb[0].mxu0 %v1766
        %v1913 = vpop.f32.mrb[0].mxu0
        %v1914 = vadd.f32 %v1715, %v1913
        %v1915 = vpop.f32.mrb[0].mxu0
        %v1916 = vpop.f32.mrb[0].mxu0
        %v1917 = vadd.f32 %v1715, %v1916
        %v1918 = vpop.f32.mrb[0].mxu0
        %1919 = vmatprep.mubr.bf16.mxu0 0
        %1920 = vmatmul.mubr.bf16.gmra.mrb[0].mxu0 %v1769
        %v1921 = vpop.f32.mrb[0].mxu0
        %v1922 = vadd.f32 %v1715, %v1921
        %v1923 = vpop.f32.mrb[0].mxu0
        %v1924 = vpop.f32.mrb[0].mxu0
        %v1925 = vadd.f32 %v1715, %v1924
        %v1926 = vpop.f32.mrb[0].mxu0
        %1927 = vmatprep.mubr.bf16.mxu0 0
        %1928 = vmatmul.mubr.bf16.gmra.mrb[0].mxu0 %v1772
        %v1929 = vpop.f32.mrb[0].mxu0
        %v1930 = vadd.f32 %v1715, %v1929
        %v1931 = vpop.f32.mrb[0].mxu0
        %v1932 = vpop.f32.mrb[0].mxu0
        %v1933 = vadd.f32 %v1715, %v1932
        %v1934 = vpop.f32.mrb[0].mxu0
        %1935 = vmatprep.mubr.bf16.mxu0 0
        %1936 = vmatmul.mubr.bf16.gmra.mrb[0].mxu0 %v1775
        %v1937 = vpop.f32.mrb[0].mxu0
        %v1938 = vadd.f32 %v1715, %v1937
        %v1939 = vpop.f32.mrb[0].mxu0
        %v1940 = vpop.f32.mrb[0].mxu0
        %v1941 = vadd.f32 %v1715, %v1940
        %v1942 = vpop.f32.mrb[0].mxu0
        %1943 = vmatprep.mubr.bf16.mxu0 0
        %1944 = vmatmul.mubr.bf16.gmra.mrb[0].mxu0 %v1778
        %v1945 = vpop.f32.mrb[0].mxu0
        %v1946 = vadd.f32 %v1715, %v1945
        %v1947 = vpop.f32.mrb[0].mxu0
        %v1948 = vpop.f32.mrb[0].mxu0
        %v1949 = vadd.f32 %v1715, %v1948
        %v1950 = vpop.f32.mrb[0].mxu0
        %1951 = vmatprep.mubr.bf16.mxu0 0
        %1952 = vmatmul.mubr.bf16.gmra.mrb[0].mxu0 %v1781
        %v1953 = vpop.f32.mrb[0].mxu0
        %v1954 = vadd.f32 %v1715, %v1953
        %v1955 = vpop.f32.mrb[0].mxu0
        %v1956 = vpop.f32.mrb[0].mxu0
        %v1957 = vadd.f32 %v1715, %v1956
        %v1958 = vpop.f32.mrb[0].mxu0
        %1959 = vdwg.mxu0
        %v1960 = vlaneseq
        %v1961 = vand.u32 %v1960, 127
        %vm1962 = vcmp.ge.s32.totalorder %v1961, 54
        %vm1963 = vcmp.lt.s32.totalorder %v1961, 63
        %vm1964 = vmand %vm1962, %vm1963
        %v1965 = vxor.u32 %v1818, 2147483648
        %v1966 = vxor.u32 %v1821, 2147483648
        %v1967 = vxor.u32 %v1826, 2147483648
        %v1968 = vxor.u32 %v1829, 2147483648
        %v1969 = vxor.u32 %v1834, 2147483648
        %v1970 = vxor.u32 %v1837, 2147483648
        %v1971 = vxor.u32 %v1842, 2147483648
        %v1972 = vxor.u32 %v1845, 2147483648
        %v1973 = vxor.u32 %v1850, 2147483648
        %v1974 = vxor.u32 %v1853, 2147483648
        %v1975 = vxor.u32 %v1858, 2147483648
        %v1976 = vxor.u32 %v1861, 2147483648
        %v1977 = vxor.u32 %v1866, 2147483648
        %v1978 = vxor.u32 %v1869, 2147483648
        %v1979 = vxor.u32 %v1874, 2147483648
        %v1980 = vxor.u32 %v1877, 2147483648
        %v1981 = vxor.u32 %v1882, 2147483648
        %v1982 = vxor.u32 %v1885, 2147483648
        %v1983 = vxor.u32 %v1890, 2147483648
        %v1984 = vxor.u32 %v1893, 2147483648
        %v1985 = vxor.u32 %v1898, 2147483648
        %v1986 = vxor.u32 %v1901, 2147483648
        %v1987 = vxor.u32 %v1906, 2147483648
        %v1988 = vxor.u32 %v1909, 2147483648
        %v1989 = vxor.u32 %v1914, 2147483648
        %v1990 = vxor.u32 %v1917, 2147483648
        %v1991 = vxor.u32 %v1922, 2147483648
        %v1992 = vxor.u32 %v1925, 2147483648
        %v1993 = vxor.u32 %v1930, 2147483648
        %v1994 = vxor.u32 %v1933, 2147483648
        %v1995 = vxor.u32 %v1938, 2147483648
        %v1996 = vxor.u32 %v1941, 2147483648
        %v1997 = vxor.u32 %v1946, 2147483648
        %v1998 = vxor.u32 %v1949, 2147483648
        %v1999 = vxor.u32 %v1954, 2147483648
        %v2000 = vxor.u32 %v1957, 2147483648
        %v2001 = vmul.f32 %v1965, 1.442695
        %v2002 = vpow.pop %v2001
        %v2003 = vmul.f32 %v1966, 1.442695
        %v2004 = vpow.pop %v2003
        %v2005 = vmul.f32 %v1967, 1.442695
        %v2006 = vpow.pop %v2005
        %v2007 = vmul.f32 %v1968, 1.442695
        %v2008 = vpow.pop %v2007
        %v2009 = vmul.f32 %v1969, 1.442695
        %v2010 = vpow.pop %v2009
        %v2011 = vmul.f32 %v1970, 1.442695
        %v2012 = vpow.pop %v2011
        %v2013 = vmul.f32 %v1971, 1.442695
        %v2014 = vpow.pop %v2013
        %v2015 = vmul.f32 %v1972, 1.442695
        %v2016 = vpow.pop %v2015
        %v2017 = vmul.f32 %v1973, 1.442695
        %v2018 = vpow.pop %v2017
        %v2019 = vmul.f32 %v1974, 1.442695
        %v2020 = vpow.pop %v2019
        %v2021 = vmul.f32 %v1975, 1.442695
        %v2022 = vpow.pop %v2021
        %v2023 = vmul.f32 %v1976, 1.442695
        %v2024 = vpow.pop %v2023
        %v2025 = vmul.f32 %v1977, 1.442695
        %v2026 = vpow.pop %v2025
        %v2027 = vmul.f32 %v1978, 1.442695
        %v2028 = vpow.pop %v2027
        %v2029 = vmul.f32 %v1979, 1.442695
        %v2030 = vpow.pop %v2029
        %v2031 = vmul.f32 %v1980, 1.442695
        %v2032 = vpow.pop %v2031
        %v2033 = vmul.f32 %v1981, 1.442695
        %v2034 = vpow.pop %v2033
        %v2035 = vmul.f32 %v1982, 1.442695
        %v2036 = vpow.pop %v2035
        %v2037 = vmul.f32 %v1983, 1.442695
        %v2038 = vpow.pop %v2037
        %v2039 = vmul.f32 %v1984, 1.442695
        %v2040 = vpow.pop %v2039
        %v2041 = vmul.f32 %v1985, 1.442695
        %v2042 = vpow.pop %v2041
        %v2043 = vmul.f32 %v1986, 1.442695
        %v2044 = vpow.pop %v2043
        %v2045 = vmul.f32 %v1987, 1.442695
        %v2046 = vpow.pop %v2045
        %v2047 = vmul.f32 %v1988, 1.442695
        %v2048 = vpow.pop %v2047
        %v2049 = vmul.f32 %v1989, 1.442695
        %v2050 = vpow.pop %v2049
        %v2051 = vmul.f32 %v1990, 1.442695
        %v2052 = vpow.pop %v2051
        %v2053 = vmul.f32 %v1991, 1.442695
        %v2054 = vpow.pop %v2053
        %v2055 = vmul.f32 %v1992, 1.442695
        %v2056 = vpow.pop %v2055
        %v2057 = vmul.f32 %v1993, 1.442695
        %v2058 = vpow.pop %v2057
        %v2059 = vmul.f32 %v1994, 1.442695
        %v2060 = vpow.pop %v2059
        %v2061 = vmul.f32 %v1995, 1.442695
        %v2062 = vpow.pop %v2061
        %v2063 = vmul.f32 %v1996, 1.442695
        %v2064 = vpow.pop %v2063
        %v2065 = vmul.f32 %v1997, 1.442695
        %v2066 = vpow.pop %v2065
        %v2067 = vmul.f32 %v1998, 1.442695
        %v2068 = vpow.pop %v2067
        %v2069 = vmul.f32 %v1999, 1.442695
        %v2070 = vpow.pop %v2069
        %v2071 = vmul.f32 %v2000, 1.442695
        %v2072 = vpow.pop %v2071
        %v2073 = vadd.f32 %v2002, 1.0
        %v2074 = vadd.f32 %v2004, 1.0
        %v2075 = vadd.f32 %v2006, 1.0
        %v2076 = vadd.f32 %v2008, 1.0
        %v2077 = vadd.f32 %v2010, 1.0
        %v2078 = vadd.f32 %v2012, 1.0
        %v2079 = vadd.f32 %v2014, 1.0
        %v2080 = vadd.f32 %v2016, 1.0
        %v2081 = vadd.f32 %v2018, 1.0
        %v2082 = vadd.f32 %v2020, 1.0
        %v2083 = vadd.f32 %v2022, 1.0
        %v2084 = vadd.f32 %v2024, 1.0
        %v2085 = vadd.f32 %v2026, 1.0
        %v2086 = vadd.f32 %v2028, 1.0
        %v2087 = vadd.f32 %v2030, 1.0
        %v2088 = vadd.f32 %v2032, 1.0
        %v2089 = vadd.f32 %v2034, 1.0
        %v2090 = vadd.f32 %v2036, 1.0
        %v2091 = vadd.f32 %v2038, 1.0
        %v2092 = vadd.f32 %v2040, 1.0
        %v2093 = vadd.f32 %v2042, 1.0
        %v2094 = vadd.f32 %v2044, 1.0
        %v2095 = vadd.f32 %v2046, 1.0
        %v2096 = vadd.f32 %v2048, 1.0
        %v2097 = vadd.f32 %v2050, 1.0
        %v2098 = vadd.f32 %v2052, 1.0
        %v2099 = vadd.f32 %v2054, 1.0
        %v2100 = vadd.f32 %v2056, 1.0
        %v2101 = vadd.f32 %v2058, 1.0
        %v2102 = vadd.f32 %v2060, 1.0
        %v2103 = vadd.f32 %v2062, 1.0
        %v2104 = vadd.f32 %v2064, 1.0
        %v2105 = vadd.f32 %v2066, 1.0
        %v2106 = vadd.f32 %v2068, 1.0
        %v2107 = vadd.f32 %v2070, 1.0
        %v2108 = vadd.f32 %v2072, 1.0
        %v2109 = vrcp.pop %v2073
        %v2110 = vmul.f32 1.0, %v2109
        %v2111 = vrcp.pop %v2074
        %v2112 = vmul.f32 1.0, %v2111
        %v2113 = vrcp.pop %v2075
        %v2114 = vmul.f32 1.0, %v2113
        %v2115 = vrcp.pop %v2076
        %v2116 = vmul.f32 1.0, %v2115
        %v2117 = vrcp.pop %v2077
        %v2118 = vmul.f32 1.0, %v2117
        %v2119 = vrcp.pop %v2078
        %v2120 = vmul.f32 1.0, %v2119
        %v2121 = vrcp.pop %v2079
        %v2122 = vmul.f32 1.0, %v2121
        %v2123 = vrcp.pop %v2080
        %v2124 = vmul.f32 1.0, %v2123
        %v2125 = vrcp.pop %v2081
        %v2126 = vmul.f32 1.0, %v2125
        %v2127 = vrcp.pop %v2082
        %v2128 = vmul.f32 1.0, %v2127
        %v2129 = vrcp.pop %v2083
        %v2130 = vmul.f32 1.0, %v2129
        %v2131 = vrcp.pop %v2084
        %v2132 = vmul.f32 1.0, %v2131
        %v2133 = vrcp.pop %v2085
        %v2134 = vmul.f32 1.0, %v2133
        %v2135 = vrcp.pop %v2086
        %v2136 = vmul.f32 1.0, %v2135
        %v2137 = vrcp.pop %v2087
        %v2138 = vmul.f32 1.0, %v2137
        %v2139 = vrcp.pop %v2088
        %v2140 = vmul.f32 1.0, %v2139
        %v2141 = vrcp.pop %v2089
        %v2142 = vmul.f32 1.0, %v2141
        %v2143 = vrcp.pop %v2090
        %v2144 = vmul.f32 1.0, %v2143
        %v2145 = vrcp.pop %v2091
        %v2146 = vmul.f32 1.0, %v2145
        %v2147 = vrcp.pop %v2092
        %v2148 = vmul.f32 1.0, %v2147
        %v2149 = vrcp.pop %v2093
        %v2150 = vmul.f32 1.0, %v2149
        %v2151 = vrcp.pop %v2094
        %v2152 = vmul.f32 1.0, %v2151
        %v2153 = vrcp.pop %v2095
        %v2154 = vmul.f32 1.0, %v2153
        %v2155 = vrcp.pop %v2096
        %v2156 = vmul.f32 1.0, %v2155
        %v2157 = vrcp.pop %v2097
        %v2158 = vmul.f32 1.0, %v2157
        %v2159 = vrcp.pop %v2098
        %v2160 = vmul.f32 1.0, %v2159
        %v2161 = vrcp.pop %v2099
        %v2162 = vmul.f32 1.0, %v2161
        %v2163 = vrcp.pop %v2100
        %v2164 = vmul.f32 1.0, %v2163
        %v2165 = vrcp.pop %v2101
        %v2166 = vmul.f32 1.0, %v2165
        %v2167 = vrcp.pop %v2102
        %v2168 = vmul.f32 1.0, %v2167
        %v2169 = vrcp.pop %v2103
        %v2170 = vmul.f32 1.0, %v2169
        %v2171 = vrcp.pop %v2104
        %v2172 = vmul.f32 1.0, %v2171
        %v2173 = vrcp.pop %v2105
        %v2174 = vmul.f32 1.0, %v2173
        %v2175 = vrcp.pop %v2106
        %v2176 = vmul.f32 1.0, %v2175
        %v2177 = vrcp.pop %v2107
        %v2178 = vmul.f32 1.0, %v2177
        %v2179 = vrcp.pop %v2108
        %v2180 = vmul.f32 1.0, %v2179
        %v2181 = vsel %vm1964, %v2110, %v1818
        %v2182 = vsel %vm1964, %v2112, %v1821
        %v2183 = vsel %vm1964, %v2114, %v1826
        %v2184 = vsel %vm1964, %v2116, %v1829
        %v2185 = vsel %vm1964, %v2118, %v1834
        %v2186 = vsel %vm1964, %v2120, %v1837
        %v2187 = vsel %vm1964, %v2122, %v1842
        %v2188 = vsel %vm1964, %v2124, %v1845
        %v2189 = vsel %vm1964, %v2126, %v1850
        %v2190 = vsel %vm1964, %v2128, %v1853
        %v2191 = vsel %vm1964, %v2130, %v1858
        %v2192 = vsel %vm1964, %v2132, %v1861
        %v2193 = vsel %vm1964, %v2134, %v1866
        %v2194 = vsel %vm1964, %v2136, %v1869
        %v2195 = vsel %vm1964, %v2138, %v1874
        %v2196 = vsel %vm1964, %v2140, %v1877
        %v2197 = vsel %vm1964, %v2142, %v1882
        %v2198 = vsel %vm1964, %v2144, %v1885
        %v2199 = vsel %vm1964, %v2146, %v1890
        %v2200 = vsel %vm1964, %v2148, %v1893
        %v2201 = vsel %vm1964, %v2150, %v1898
        %v2202 = vsel %vm1964, %v2152, %v1901
        %v2203 = vsel %vm1964, %v2154, %v1906
        %v2204 = vsel %vm1964, %v2156, %v1909
        %v2205 = vsel %vm1964, %v2158, %v1914
        %v2206 = vsel %vm1964, %v2160, %v1917
        %v2207 = vsel %vm1964, %v2162, %v1922
        %v2208 = vsel %vm1964, %v2164, %v1925
        %v2209 = vsel %vm1964, %v2166, %v1930
        %v2210 = vsel %vm1964, %v2168, %v1933
        %v2211 = vsel %vm1964, %v2170, %v1938
        %v2212 = vsel %vm1964, %v2172, %v1941
        %v2213 = vsel %vm1964, %v2174, %v1946
        %v2214 = vsel %vm1964, %v2176, %v1949
        %v2215 = vsel %vm1964, %v2178, %v1954
        %v2216 = vsel %vm1964, %v2180, %v1957
        %2217 = vst [vmem:[%s217] sm:$0xff] %v2181
        %2218 = vst [vmem:[%s217 + $0x8] sm:$0xff] %v2182
        %2219 = vst [vmem:[%s217 + $0x10] sm:$0xff] %v2183
        %2220 = vst [vmem:[%s217 + $0x18] sm:$0xff] %v2184
        %2221 = vst [vmem:[%s217 + $0x20] sm:$0xff] %v2185
        %2222 = vst [vmem:[%s217 + $0x28] sm:$0xff] %v2186
        %2223 = vst [vmem:[%s217 + $0x30] sm:$0xff] %v2187
        %2224 = vst [vmem:[%s217 + $0x38] sm:$0xff] %v2188
        %2225 = vst [vmem:[%s217 + $0x40] sm:$0xff] %v2189
        %2226 = vst [vmem:[%s217 + $0x48] sm:$0xff] %v2190
        %2227 = vst [vmem:[%s217 + $0x50] sm:$0xff] %v2191
        %2228 = vst [vmem:[%s217 + $0x58] sm:$0xff] %v2192
        %2229 = vst [vmem:[%s217 + $0x60] sm:$0xff] %v2193
        %2230 = vst [vmem:[%s217 + $0x68] sm:$0xff] %v2194
        %2231 = vst [vmem:[%s217 + $0x70] sm:$0xff] %v2195
        %2232 = vst [vmem:[%s217 + $0x78] sm:$0xff] %v2196
        %2233 = vst [vmem:[%s217 + $0x80] sm:$0xff] %v2197
        %2234 = vst [vmem:[%s217 + $0x88] sm:$0xff] %v2198
        %2235 = vst [vmem:[%s217 + $0x90] sm:$0xff] %v2199
        %2236 = vst [vmem:[%s217 + $0x98] sm:$0xff] %v2200
        %2237 = vst [vmem:[%s217 + $0xa0] sm:$0xff] %v2201
        %2238 = vst [vmem:[%s217 + $0xa8] sm:$0xff] %v2202
        %2239 = vst [vmem:[%s217 + $0xb0] sm:$0xff] %v2203
        %2240 = vst [vmem:[%s217 + $0xb8] sm:$0xff] %v2204
        %2241 = vst [vmem:[%s217 + $0xc0] sm:$0xff] %v2205
        %2242 = vst [vmem:[%s217 + $0xc8] sm:$0xff] %v2206
        %2243 = vst [vmem:[%s217 + $0xd0] sm:$0xff] %v2207
        %2244 = vst [vmem:[%s217 + $0xd8] sm:$0xff] %v2208
        %2245 = vst [vmem:[%s217 + $0xe0] sm:$0xff] %v2209
        %2246 = vst [vmem:[%s217 + $0xe8] sm:$0xff] %v2210
        %2247 = vst [vmem:[%s217 + $0xf0] sm:$0xff] %v2211
        %2248 = vst [vmem:[%s217 + $0xf8] sm:$0xff] %v2212
        %2249 = vst [vmem:[%s217 + $0x100] sm:$0xff] %v2213
        %2250 = vst [vmem:[%s217 + $0x108] sm:$0xff] %v2214
        %2251 = vst [vmem:[%s217 + $0x110] sm:$0xff] %v2215
        %2252 = vst [vmem:[%s217 + $0x118] sm:$0xff] %v2216
        %s2253 = sand.u32 %s137, 1
        %s2254 = scalar_lea.sflag [#allocation3], %s2253
        %s2255 = sand.u32 %s137, 1
        %s2256 = smul.addr %s2255, 288
        %s2257 = scalar_lea.vmem [#allocation2], %s2256
        // Predicated region
        $region41: #{tpu_custom_call.1} parent=39 // pred_check
          %p2258 = pneg %p147
        $region42: #{tpu_custom_call.1} parent=39 // pred_check_branch
          %2260 = sbr.rel (%p2258) target = $region44
        $region43: #{tpu_custom_call.1} parent=39 // pred_region
          %s2262 = ssub.s32 4608, 4608
          %2263 = vsyncadd %s2254, %s2262
          %s2264 = smul.addr %s19, 36
          %s2265 = smul.addr %s2264, 128
          %s2266 = scalar_lea.hbm %s5, %s2265
          %s2267 = sshll.u32 %s2257, 4
          %s2268 = int_to_ptr.vmem [resolvable:$true] %s2267
          %2273 = dma.vmem_to_hbm [thread:$0]  %s2268, 4608, %s2266, %s2254, 128, 128, 8
        $region44: #{tpu_custom_call.1} parent=39 // pred_fallthru
          _
      $region40: #{tpu_custom_call.1} parent=5 // pred_fallthru
        _
      %p2274 = scmp.le.s32.totalorder 2, %s14
      // Predicated region
      $region45: #{tpu_custom_call.1} parent=5 // pred_check
        %p2275 = pneg %p2274
      $region46: #{tpu_custom_call.1} parent=5 // pred_check_branch
        %2277 = sbr.rel (%p2275) target = $region48
      $region47: #{tpu_custom_call.1} parent=5 // pred_region
        %s2278 = ssub.s32 %s14, 2
        // Predicated region
        $region49: #{tpu_custom_call.1} parent=47 // pred_check
          %p2279 = pneg %p153
        $region50: #{tpu_custom_call.1} parent=47 // pred_check_branch
          %2281 = sbr.rel (%p2279) target = $region52
        $region51: #{tpu_custom_call.1} parent=47 // pred_region
          %s2282 = sand.u32 %s138, 1
          %s2283 = scalar_lea.sflag [#allocation3], %s2282
          %s2284 = sand.u32 %s138, 1
          %s2285 = smul.addr %s2284, 288
          %s2286 = scalar_lea.vmem [#allocation2], %s2285
          %2287 = dma.done %s2283, 4608
        $region52: #{tpu_custom_call.1} parent=47 // pred_fallthru
          _
      $region48: #{tpu_custom_call.1} parent=5 // pred_fallthru
        _
    $region6: #{tpu_custom_call.1} parent=1 // loop_footer
      %s18 = sadd.s32 1, %s14
    $region7: #{tpu_custom_call.1} parent=1 // loop_footer_branch
      %13 = sbr.rel target = $region3
    $region8: #{tpu_custom_call.1} parent=1 // loop_exit
      _
    %2288 = vsyncpa [#allocation3], 1
    %s2289 = scalar_lea.sflag [#allocation3], 1
    %2290 = vsyncpa %s2289, 1

</llo_original>
